<compile_context>
chip_gen: v6e
topology: v6e:2x2x1
jax: 0.10.0
libtpu: 0.0.40
codegen_flags: <defaults>
</compile_context>

<pallas_src>
import functools

import jax
import jax.numpy as jnp
from jax.experimental import pallas as pl
from jax.experimental.pallas import tpu as pltpu


def _scale_shift_kernel(x_ref, w_ref, b_ref, gamma_ref, beta_ref, grp_ref,
                        scale_ref, shift_ref, o_ref, xpad_ref,
                        *, eps, group_size, H, W):
    """Fused conv3x3 + GroupNorm + scale/shift + SiLU for one batch element.

    x_ref    : (1, H, W, Cin)     unpadded NHWC input tile
    w_ref    : (9*Cin, Cout)      conv weights, (ky, kx, cin)-major, bf16
    b_ref    : (1, Cout)          conv bias
    gamma_ref: (1, Cout)          GroupNorm weight
    beta_ref : (1, Cout)          GroupNorm bias
    grp_ref  : (Cout, Cout)       group-membership matrix (1 if same group)
    scale_ref: (1, 1, Cout)       per-(batch, channel) scale
    shift_ref: (1, 1, Cout)       per-(batch, channel) shift
    o_ref    : (1, H*W, Cout)     output tile (2D inside the kernel)
    xpad_ref : (H+2, W+2, Cin)    VMEM scratch used for zero padding
    """
    Cin = x_ref.shape[3]
    Cout = o_ref.shape[2]

    # ---- in-kernel zero padding (VMEM only; no wrapper jnp.pad HBM pass) ----
    # Zero every step so correctness holds even if the batch grid axis is
    # sharded across TensorCores (each core has its own scratch).
    xpad_ref[...] = jnp.zeros_like(xpad_ref)
    xpad_ref[1:H + 1, 1:W + 1, :] = x_ref[0]

    # ---- im2col: one MXU matmul, contraction depth 9*Cin -------------------
    taps = []
    for dy in range(3):
        for dx in range(3):
            taps.append(xpad_ref[dy:dy + H, dx:dx + W, :])      # (H, W, Cin)
    im2col = jnp.concatenate(taps, axis=-1)                     # (H, W, 9*Cin)
    im2col = im2col.reshape(H * W, 9 * Cin).astype(jnp.bfloat16)

    acc = jnp.dot(im2col, w_ref[...],
                  preferred_element_type=jnp.float32)           # (H*W, Cout) f32
    acc = acc + b_ref[...].astype(jnp.float32)

    # ---- GroupNorm stats (f32) via group-membership matmul -----------------
    n = jnp.float32(H * W * group_size)
    s1 = jnp.sum(acc, axis=0, keepdims=True)                    # (1, Cout)
    s2 = jnp.sum(acc * acc, axis=0, keepdims=True)              # (1, Cout)
    gsum1 = jnp.dot(s1, grp_ref[...], preferred_element_type=jnp.float32)
    gsum2 = jnp.dot(s2, grp_ref[...], preferred_element_type=jnp.float32)
    mean = gsum1 / n
    var = jnp.maximum(gsum2 / n - mean * mean, 0.0)             # clamp (can dip < 0)
    inv = jax.lax.rsqrt(var + eps)

    # ---- fold GN affine + (scale+1, shift) into one per-channel FMA --------
    sc1 = scale_ref[0].astype(jnp.float32) + 1.0                # (1, Cout)
    g_eff = gamma_ref[...].astype(jnp.float32) * sc1
    b_eff = beta_ref[...].astype(jnp.float32) * sc1 + shift_ref[0].astype(jnp.float32)
    a_ch = inv * g_eff
    b_ch = b_eff - mean * a_ch

    y = acc * a_ch + b_ch
    y = y * jax.nn.sigmoid(y)                                   # SiLU
    o_ref[0] = y.astype(o_ref.dtype)


def scale_shift_forward(x_nchw, weight_oihw, bias, gamma, beta,
                        scale=None, shift=None, *, groups=8, eps=1e-5):
    """ScaleShift forward. Inputs/outputs follow PyTorch NCHW conventions."""
    B, Cin, H, W = x_nchw.shape
    Cout = weight_oihw.shape[0]
    assert Cout % groups == 0
    Cg = Cout // groups

    # NCHW -> NHWC (channel on lanes).  No spatial padding here: done in-kernel.
    x = jnp.transpose(x_nchw, (0, 2, 3, 1))                     # (B, H, W, Cin)
    # OIHW -> (ky, kx, cin)-major (9*Cin, Cout), bf16 operand for the MXU.
    w2 = jnp.transpose(weight_oihw, (2, 3, 1, 0)).reshape(9 * Cin, Cout)
    w2 = w2.astype(jnp.bfloat16)

    if scale is None:
        scale = jnp.zeros((B, Cout, 1, 1), x.dtype)             # (scale + 1) == 1
        shift = jnp.zeros((B, Cout, 1, 1), x.dtype)
    scale2 = scale.reshape(B, 1, Cout)
    shift2 = shift.reshape(B, 1, Cout)

    gid = jnp.arange(Cout) // Cg
    grp = (gid[:, None] == gid[None, :]).astype(jnp.float32)    # (Cout, Cout)

    bias2 = bias.reshape(1, Cout)
    gamma2 = gamma.reshape(1, Cout)
    beta2 = beta.reshape(1, Cout)

    kernel = functools.partial(_scale_shift_kernel,
                               eps=eps, group_size=Cg, H=H, W=W)

    out = pl.pallas_call(
        kernel,
        out_shape=jax.ShapeDtypeStruct((B, H * W, Cout), x.dtype),
        grid_spec=pltpu.PrefetchScalarGridSpec(
            num_scalar_prefetch=0,
            grid=(B,),
            in_specs=[
                pl.BlockSpec((1, H, W, Cin), lambda b: (b, 0, 0, 0)),   # x (unpadded)
                pl.BlockSpec((9 * Cin, Cout), lambda b: (0, 0)),        # conv weight
                pl.BlockSpec((1, Cout), lambda b: (0, 0)),              # conv bias
                pl.BlockSpec((1, Cout), lambda b: (0, 0)),              # GN gamma
                pl.BlockSpec((1, Cout), lambda b: (0, 0)),              # GN beta
                pl.BlockSpec((Cout, Cout), lambda b: (0, 0)),           # group matrix
                pl.BlockSpec((1, 1, Cout), lambda b: (b, 0, 0)),        # scale
                pl.BlockSpec((1, 1, Cout), lambda b: (b, 0, 0)),        # shift
            ],
            out_specs=pl.BlockSpec((1, H * W, Cout), lambda b: (b, 0, 0)),
            scratch_shapes=[pltpu.VMEM((H + 2, W + 2, Cin), x.dtype)],
        ),
        compiler_params=pltpu.CompilerParams(dimension_semantics=("parallel",)),
    )(x, w2, bias2, gamma2, beta2, grp, scale2, shift2)

    out = out.reshape(B, H, W, Cout)
    return jnp.transpose(out, (0, 3, 1, 2))                     # back to NCHW


def _reference(x_nchw, weight_oihw, bias, gamma, beta, scale, shift,
               groups=8, eps=1e-5):
    y = jax.lax.conv_general_dilated(
        x_nchw, weight_oihw, window_strides=(1, 1), padding=((1, 1), (1, 1)),
        dimension_numbers=('NCHW', 'OIHW', 'NCHW'))
    y = y + bias.reshape(1, -1, 1, 1)
    B, C, H, W = y.shape
    yg = y.reshape(B, groups, C // groups, H, W)
    mean = yg.mean(axis=(2, 3, 4), keepdims=True)
    var = ((yg - mean) ** 2).mean(axis=(2, 3, 4), keepdims=True)
    yn = (yg - mean) / jnp.sqrt(var + eps)
    y = yn.reshape(B, C, H, W) * gamma.reshape(1, -1, 1, 1) + beta.reshape(1, -1, 1, 1)
    y = y * (scale + 1.0) + shift
    return y * jax.nn.sigmoid(y)


if __name__ == "__main__":
    B, Cin, Cout, H, W, G = 2, 4, 16, 16, 16, 8

    key = jax.random.PRNGKey(0)
    kx, kw, kb, kg, kbt, ksc, ksh = jax.random.split(key, 7)

    x = jax.random.normal(kx, (B, Cin, H, W), jnp.float32)
    weight = jax.random.normal(kw, (Cout, Cin, 3, 3), jnp.float32) * 0.1   # OIHW
    bias = jax.random.normal(kb, (Cout,), jnp.float32) * 0.1
    gamma = 1.0 + 0.1 * jax.random.normal(kg, (Cout,), jnp.float32)        # GN weight
    beta = 0.1 * jax.random.normal(kbt, (Cout,), jnp.float32)              # GN bias
    scale = 0.2 * jax.random.normal(ksc, (B, Cout, 1, 1), jnp.float32)
    shift = 0.2 * jax.random.normal(ksh, (B, Cout, 1, 1), jnp.float32)

    out = scale_shift_forward(x, weight, bias, gamma, beta, scale, shift, groups=G)
    out = jax.block_until_ready(out)

    ref = _reference(x, weight, bias, gamma, beta, scale, shift, groups=G)
    assert out.shape == (B, Cout, H, W)
    # Tolerance loosened vs the pure-f32 version because conv operands feed the
    # MXU in bf16 (GroupNorm stats and the elementwise tail stay f32).
    assert jnp.allclose(out, ref, rtol=2e-2, atol=2e-2), "mismatch vs reference"

    print("KERNEL_OK")
</pallas_src>

<mosaic_0001>
module attributes {stable_mosaic.version = 11 : i64} {
  func.func @_scale_shift_kernel(%arg0: i32, %arg1: memref<1x16x16x4xf32, #tpu.memory_space<vmem>>, %arg2: memref<36x16xbf16, #tpu.memory_space<vmem>>, %arg3: memref<1x16xf32, #tpu.memory_space<vmem>>, %arg4: memref<1x16xf32, #tpu.memory_space<vmem>>, %arg5: memref<1x16xf32, #tpu.memory_space<vmem>>, %arg6: memref<16x16xf32, #tpu.memory_space<vmem>>, %arg7: memref<1x1x16xf32, #tpu.memory_space<vmem>>, %arg8: memref<1x1x16xf32, #tpu.memory_space<vmem>>, %arg9: memref<1x256x16xf32, #tpu.memory_space<vmem>>, %arg10: memref<18x18x4xf32, #tpu.memory_space<vmem>>) attributes {dimension_semantics = [#tpu.dimension_semantics<parallel>], iteration_bounds = array<i64: 2>, scalar_prefetch = 0 : i64, scratch_operands = 1 : i64, tpu.core_type = #tpu.core_type<tc>, window_params = [{transform_indices = @transform_0, window_bounds = array<i64: 1, 16, 16, 4>}, {pipeline_mode = #tpu.pipeline_mode<synchronous>, transform_indices = @transform_1, window_bounds = array<i64: 36, 16>}, {pipeline_mode = #tpu.pipeline_mode<synchronous>, transform_indices = @transform_2, window_bounds = array<i64: 1, 16>}, {pipeline_mode = #tpu.pipeline_mode<synchronous>, transform_indices = @transform_3, window_bounds = array<i64: 1, 16>}, {pipeline_mode = #tpu.pipeline_mode<synchronous>, transform_indices = @transform_4, window_bounds = array<i64: 1, 16>}, {pipeline_mode = #tpu.pipeline_mode<synchronous>, transform_indices = @transform_5, window_bounds = array<i64: 16, 16>}, {transform_indices = @transform_6, window_bounds = array<i64: 1, 1, 16>}, {transform_indices = @transform_7, window_bounds = array<i64: 1, 1, 16>}, {transform_indices = @transform_8, window_bounds = array<i64: 1, 256, 16>}]} {
    %cst = arith.constant 0.000000e+00 : f32
    %0 = vector.broadcast %cst : f32 to vector<18x18x4xf32>
    %c0 = arith.constant 0 : index
    %c0_0 = arith.constant 0 : index
    %c0_1 = arith.constant 0 : index
    %1 = vector.load %arg10[%c0, %c0_0, %c0_1] : memref<18x18x4xf32, #tpu.memory_space<vmem>>, vector<18x18x4xf32>
    tpu.vector_store %arg10[%c0, %c0_0, %c0_1], %0 {strides = array<i32>} : memref<18x18x4xf32, #tpu.memory_space<vmem>>, vector<18x18x4xf32>,
    %c0_2 = arith.constant 0 : index
    %c0_3 = arith.constant 0 : index
    %c0_4 = arith.constant 0 : index
    %c0_5 = arith.constant 0 : index
    %2 = vector.load %arg1[%c0_2, %c0_3, %c0_4, %c0_5] : memref<1x16x16x4xf32, #tpu.memory_space<vmem>>, vector<1x16x16x4xf32>
    %3 = vector.shape_cast %2 : vector<1x16x16x4xf32> to vector<16x16x4xf32>
    %c1 = arith.constant 1 : index
    %c1_6 = arith.constant 1 : index
    %c0_7 = arith.constant 0 : index
    %4 = vector.load %arg10[%c1, %c1_6, %c0_7] : memref<18x18x4xf32, #tpu.memory_space<vmem>>, vector<16x16x4xf32>
    tpu.vector_store %arg10[%c1, %c1_6, %c0_7], %3 {strides = array<i32>} : memref<18x18x4xf32, #tpu.memory_space<vmem>>, vector<16x16x4xf32>,
    %c0_8 = arith.constant 0 : index
    %c0_9 = arith.constant 0 : index
    %c0_10 = arith.constant 0 : index
    %5 = vector.load %arg10[%c0_8, %c0_9, %c0_10] : memref<18x18x4xf32, #tpu.memory_space<vmem>>, vector<16x16x4xf32>
    %c0_11 = arith.constant 0 : index
    %c1_12 = arith.constant 1 : index
    %c0_13 = arith.constant 0 : index
    %6 = vector.load %arg10[%c0_11, %c1_12, %c0_13] : memref<18x18x4xf32, #tpu.memory_space<vmem>>, vector<16x16x4xf32>
    %c0_14 = arith.constant 0 : index
    %c2 = arith.constant 2 : index
    %c0_15 = arith.constant 0 : index
    %7 = vector.load %arg10[%c0_14, %c2, %c0_15] : memref<18x18x4xf32, #tpu.memory_space<vmem>>, vector<16x16x4xf32>
    %c1_16 = arith.constant 1 : index
    %c0_17 = arith.constant 0 : index
    %c0_18 = arith.constant 0 : index
    %8 = vector.load %arg10[%c1_16, %c0_17, %c0_18] : memref<18x18x4xf32, #tpu.memory_space<vmem>>, vector<16x16x4xf32>
    %c1_19 = arith.constant 1 : index
    %c1_20 = arith.constant 1 : index
    %c0_21 = arith.constant 0 : index
    %9 = vector.load %arg10[%c1_19, %c1_20, %c0_21] : memref<18x18x4xf32, #tpu.memory_space<vmem>>, vector<16x16x4xf32>
    %c1_22 = arith.constant 1 : index
    %c2_23 = arith.constant 2 : index
    %c0_24 = arith.constant 0 : index
    %10 = vector.load %arg10[%c1_22, %c2_23, %c0_24] : memref<18x18x4xf32, #tpu.memory_space<vmem>>, vector<16x16x4xf32>
    %c2_25 = arith.constant 2 : index
    %c0_26 = arith.constant 0 : index
    %c0_27 = arith.constant 0 : index
    %11 = vector.load %arg10[%c2_25, %c0_26, %c0_27] : memref<18x18x4xf32, #tpu.memory_space<vmem>>, vector<16x16x4xf32>
    %c2_28 = arith.constant 2 : index
    %c1_29 = arith.constant 1 : index
    %c0_30 = arith.constant 0 : index
    %12 = vector.load %arg10[%c2_28, %c1_29, %c0_30] : memref<18x18x4xf32, #tpu.memory_space<vmem>>, vector<16x16x4xf32>
    %c2_31 = arith.constant 2 : index
    %c2_32 = arith.constant 2 : index
    %c0_33 = arith.constant 0 : index
    %13 = vector.load %arg10[%c2_31, %c2_32, %c0_33] : memref<18x18x4xf32, #tpu.memory_space<vmem>>, vector<16x16x4xf32>
    %14 = tpu.concatenate %5, %6, %7, %8, %9, %10, %11, %12, %13 in 2 : vector<16x16x4xf32>, vector<16x16x4xf32>, vector<16x16x4xf32>, vector<16x16x4xf32>, vector<16x16x4xf32>, vector<16x16x4xf32>, vector<16x16x4xf32>, vector<16x16x4xf32>, vector<16x16x4xf32> -> vector<16x16x36xf32>
    %15 = vector.shape_cast %14 : vector<16x16x36xf32> to vector<256x36xf32>
    %16 = arith.truncf %15 : vector<256x36xf32> to vector<256x36xbf16>
    %c0_34 = arith.constant 0 : index
    %c0_35 = arith.constant 0 : index
    %17 = vector.load %arg2[%c0_34, %c0_35] : memref<36x16xbf16, #tpu.memory_space<vmem>>, vector<36x16xbf16>
    %cst_36 = arith.constant dense<0.000000e+00> : vector<256x16xf32>
    %18 = tpu.matmul %16, %17, %cst_36 {dimension_numbers = #tpu.dot_dimension_numbers<[1], [0], [0], [1], [0, 0, 1, 1], [], []>} : vector<256x36xbf16>, vector<36x16xbf16>, vector<256x16xf32> -> vector<256x16xf32>
    %c0_37 = arith.constant 0 : index
    %c0_38 = arith.constant 0 : index
    %19 = vector.load %arg3[%c0_37, %c0_38] : memref<1x16xf32, #tpu.memory_space<vmem>>, vector<1x16xf32>
    %20 = vector.broadcast %19 : vector<1x16xf32> to vector<256x16xf32>
    %21 = arith.addf %18, %20 : vector<256x16xf32>
    %cst_39 = arith.constant dense<0.000000e+00> : vector<16xf32>
    %22 = vector.multi_reduction <add>, %21, %cst_39 [0] : vector<256x16xf32> to vector<16xf32>
    %23 = vector.shape_cast %22 : vector<16xf32> to vector<1x16xf32>
    %24 = arith.mulf %21, %21 : vector<256x16xf32>
    %cst_40 = arith.constant dense<0.000000e+00> : vector<16xf32>
    %25 = vector.multi_reduction <add>, %24, %cst_40 [0] : vector<256x16xf32> to vector<16xf32>
    %26 = vector.shape_cast %25 : vector<16xf32> to vector<1x16xf32>
    %c0_41 = arith.constant 0 : index
    %c0_42 = arith.constant 0 : index
    %27 = vector.load %arg6[%c0_41, %c0_42] : memref<16x16xf32, #tpu.memory_space<vmem>>, vector<16x16xf32>
    %cst_43 = arith.constant dense<0.000000e+00> : vector<1x16xf32>
    %28 = tpu.matmul %23, %27, %cst_43 {dimension_numbers = #tpu.dot_dimension_numbers<[1], [0], [0], [1], [0, 0, 1, 1], [], []>} : vector<1x16xf32>, vector<16x16xf32>, vector<1x16xf32> -> vector<1x16xf32>
    %c0_44 = arith.constant 0 : index
    %c0_45 = arith.constant 0 : index
    %29 = vector.load %arg6[%c0_44, %c0_45] : memref<16x16xf32, #tpu.memory_space<vmem>>, vector<16x16xf32>
    %cst_46 = arith.constant dense<0.000000e+00> : vector<1x16xf32>
    %30 = tpu.matmul %26, %29, %cst_46 {dimension_numbers = #tpu.dot_dimension_numbers<[1], [0], [0], [1], [0, 0, 1, 1], [], []>} : vector<1x16xf32>, vector<16x16xf32>, vector<1x16xf32> -> vector<1x16xf32>
    %cst_47 = arith.constant 5.120000e+02 : f32
    %31 = vector.broadcast %cst_47 : f32 to vector<1x16xf32>
    %32 = arith.divf %28, %31 : vector<1x16xf32>
    %cst_48 = arith.constant 5.120000e+02 : f32
    %33 = vector.broadcast %cst_48 : f32 to vector<1x16xf32>
    %34 = arith.divf %30, %33 : vector<1x16xf32>
    %35 = arith.mulf %32, %32 : vector<1x16xf32>
    %36 = arith.subf %34, %35 : vector<1x16xf32>
    %cst_49 = arith.constant 0.000000e+00 : f32
    %37 = vector.broadcast %cst_49 : f32 to vector<1x16xf32>
    %38 = arith.maximumf %36, %37 : vector<1x16xf32>
    %cst_50 = arith.constant 9.99999974E-6 : f32
    %39 = vector.broadcast %cst_50 : f32 to vector<1x16xf32>
    %40 = arith.addf %38, %39 : vector<1x16xf32>
    %41 = math.rsqrt %40 : vector<1x16xf32>
    %c0_51 = arith.constant 0 : index
    %c0_52 = arith.constant 0 : index
    %c0_53 = arith.constant 0 : index
    %42 = vector.load %arg7[%c0_51, %c0_52, %c0_53] : memref<1x1x16xf32, #tpu.memory_space<vmem>>, vector<1x1x16xf32>
    %43 = vector.shape_cast %42 : vector<1x1x16xf32> to vector<1x16xf32>
    %cst_54 = arith.constant 1.000000e+00 : f32
    %44 = vector.broadcast %cst_54 : f32 to vector<1x16xf32>
    %45 = arith.addf %43, %44 : vector<1x16xf32>
    %c0_55 = arith.constant 0 : index
    %c0_56 = arith.constant 0 : index
    %46 = vector.load %arg4[%c0_55, %c0_56] : memref<1x16xf32, #tpu.memory_space<vmem>>, vector<1x16xf32>
    %47 = arith.mulf %46, %45 : vector<1x16xf32>
    %c0_57 = arith.constant 0 : index
    %c0_58 = arith.constant 0 : index
    %48 = vector.load %arg5[%c0_57, %c0_58] : memref<1x16xf32, #tpu.memory_space<vmem>>, vector<1x16xf32>
    %49 = arith.mulf %48, %45 : vector<1x16xf32>
    %c0_59 = arith.constant 0 : index
    %c0_60 = arith.constant 0 : index
    %c0_61 = arith.constant 0 : index
    %50 = vector.load %arg8[%c0_59, %c0_60, %c0_61] : memref<1x1x16xf32, #tpu.memory_space<vmem>>, vector<1x1x16xf32>
    %51 = vector.shape_cast %50 : vector<1x1x16xf32> to vector<1x16xf32>
    %52 = arith.addf %49, %51 : vector<1x16xf32>
    %53 = arith.mulf %41, %47 : vector<1x16xf32>
    %54 = arith.mulf %32, %53 : vector<1x16xf32>
    %55 = arith.subf %52, %54 : vector<1x16xf32>
    %56 = vector.broadcast %53 : vector<1x16xf32> to vector<256x16xf32>
    %57 = arith.mulf %21, %56 : vector<256x16xf32>
    %58 = vector.broadcast %55 : vector<1x16xf32> to vector<256x16xf32>
    %59 = arith.addf %57, %58 : vector<256x16xf32>
    %60 = arith.negf %59 : vector<256x16xf32>
    %61 = math.exp %60 : vector<256x16xf32>
    %cst_62 = arith.constant 1.000000e+00 : f32
    %62 = vector.broadcast %cst_62 : f32 to vector<256x16xf32>
    %63 = arith.addf %62, %61 : vector<256x16xf32>
    %64 = arith.divf %62, %63 : vector<256x16xf32>
    %65 = arith.mulf %59, %64 : vector<256x16xf32>
    %c0_63 = arith.constant 0 : index
    %c0_64 = arith.constant 0 : index
    %c0_65 = arith.constant 0 : index
    %66 = vector.load %arg9[%c0_63, %c0_64, %c0_65] : memref<1x256x16xf32, #tpu.memory_space<vmem>>, vector<1x256x16xf32>
    %67 = vector.shape_cast %66 : vector<1x256x16xf32> to vector<256x16xf32>
    %68 = vector.shape_cast %65 : vector<256x16xf32> to vector<1x256x16xf32>
    tpu.vector_store %arg9[%c0_63, %c0_64, %c0_65], %68 {strides = array<i32>} : memref<1x256x16xf32, #tpu.memory_space<vmem>>, vector<1x256x16xf32>,
    return
  }
  func.func @transform_0(%arg0: i32) -> (i32, i32, i32, i32) {
    %c0_i32 = arith.constant 0 : i32
    %c0_i32_0 = arith.constant 0 : i32
    %c0_i32_1 = arith.constant 0 : i32
    %c0_i32_2 = arith.constant 0 : i32
    return %arg0, %c0_i32, %c0_i32_0, %c0_i32_1 : i32, i32, i32, i32
  }
  func.func @transform_1(%arg0: i32) -> (i32, i32) {
    %c0_i32 = arith.constant 0 : i32
    %c0_i32_0 = arith.constant 0 : i32
    %c0_i32_1 = arith.constant 0 : i32
    return %c0_i32, %c0_i32_0 : i32, i32
  }
  func.func @transform_2(%arg0: i32) -> (i32, i32) {
    %c0_i32 = arith.constant 0 : i32
    %c0_i32_0 = arith.constant 0 : i32
    %c0_i32_1 = arith.constant 0 : i32
    return %c0_i32, %c0_i32_0 : i32, i32
  }
  func.func @transform_3(%arg0: i32) -> (i32, i32) {
    %c0_i32 = arith.constant 0 : i32
    %c0_i32_0 = arith.constant 0 : i32
    %c0_i32_1 = arith.constant 0 : i32
    return %c0_i32, %c0_i32_0 : i32, i32
  }
  func.func @transform_4(%arg0: i32) -> (i32, i32) {
    %c0_i32 = arith.constant 0 : i32
    %c0_i32_0 = arith.constant 0 : i32
    %c0_i32_1 = arith.constant 0 : i32
    return %c0_i32, %c0_i32_0 : i32, i32
  }
  func.func @transform_5(%arg0: i32) -> (i32, i32) {
    %c0_i32 = arith.constant 0 : i32
    %c0_i32_0 = arith.constant 0 : i32
    %c0_i32_1 = arith.constant 0 : i32
    return %c0_i32, %c0_i32_0 : i32, i32
  }
  func.func @transform_6(%arg0: i32) -> (i32, i32, i32) {
    %c0_i32 = arith.constant 0 : i32
    %c0_i32_0 = arith.constant 0 : i32
    %c0_i32_1 = arith.constant 0 : i32
    return %arg0, %c0_i32, %c0_i32_0 : i32, i32, i32
  }
  func.func @transform_7(%arg0: i32) -> (i32, i32, i32) {
    %c0_i32 = arith.constant 0 : i32
    %c0_i32_0 = arith.constant 0 : i32
    %c0_i32_1 = arith.constant 0 : i32
    return %arg0, %c0_i32, %c0_i32_0 : i32, i32, i32
  }
  func.func @transform_8(%arg0: i32) -> (i32, i32, i32) {
    %c0_i32 = arith.constant 0 : i32
    %c0_i32_0 = arith.constant 0 : i32
    %c0_i32_1 = arith.constant 0 : i32
    return %arg0, %c0_i32, %c0_i32_0 : i32, i32, i32
  }
}

</mosaic_0001>

<llo_original>
// kernel: tpu_custom_call.1
$region0: #{tpu_custom_call.1}
  #allocation0 [shape = 'u32[]', space=smem, size = 0x4, offset = 0x4, fixed_abs, tag = 'smem constant byte address 0x4 - core index']
  #allocation1 [shape = 'u32[144,128]{1,0:T(1,128)}', space=vmem, size = 0x12000, scoped, tag = 'internal scratch']
  #allocation2 [shape = 'f32[18,18,4]{2,1,0:T(8,128)}', space=vmem, size = 0x36000, scoped, tag = 'scratch operand']
  %s0 = inlined_call_operand.vmem [shape: f32[2,16,16,4], index: 0, kind: input, shape index: {}]
  %s1 = inlined_call_operand.vmem [shape: bf16[36,16], index: 1, kind: input, shape index: {}]
  %s2 = inlined_call_operand.vmem [shape: f32[1,16], index: 2, kind: input, shape index: {}]
  %s3 = inlined_call_operand.vmem [shape: f32[1,16], index: 3, kind: input, shape index: {}]
  %s4 = inlined_call_operand.vmem [shape: f32[1,16], index: 4, kind: input, shape index: {}]
  %s5 = inlined_call_operand.vmem [shape: f32[16,16], index: 5, kind: input, shape index: {}]
  %s6 = inlined_call_operand.vmem [shape: f32[2,1,16], index: 6, kind: input, shape index: {}]
  %s7 = inlined_call_operand.vmem [shape: f32[2,1,16], index: 7, kind: input, shape index: {}]
  %s8 = inlined_call_operand.vmem [shape: f32[2,256,16], index: 8, kind: output, shape index: {}]
  %s9 = sld [smem:[#allocation0]]
  $region65: #{tpu_custom_call.1} parent=0
    _
  %s11 = ssub.s32 1, %s9
  %s12 = scalar_select 0, %s11, %s9
  loop: start=0, step=1, limit=4
  $region2: #{tpu_custom_call.1} parent=0 // loop_pre_header
    _
  $region3: #{tpu_custom_call.1} parent=0 // loop_header
    %s14 = sphi 0, %s18
    %p15 = scmp.ge.s32.totalorder %s14, 4
    %s24 = sphi 0, %s26
    %s27 = sphi 0, %s24
    %s28 = sphi 0, %s27
    %s44 = sphi 0, %s28
    %s48 = sphi 0, %s48
    %s50 = sphi 0, %s48
    %s51 = sphi 0, %s50
    %s65 = sphi 0, %s51
    %s69 = sphi 0, %s69
    %s71 = sphi 0, %s69
    %s72 = sphi 0, %s71
    %s86 = sphi 0, %s72
    %s90 = sphi 0, %s90
    %s92 = sphi 0, %s90
    %s93 = sphi 0, %s92
    %s107 = sphi 0, %s93
    %s111 = sphi 0, %s111
    %s113 = sphi 0, %s111
    %s114 = sphi 0, %s113
    %s128 = sphi 0, %s114
    %s132 = sphi 0, %s132
    %s134 = sphi 0, %s132
    %s135 = sphi 0, %s134
    %s149 = sphi 0, %s135
    %s155 = sphi 0, %s157
    %s158 = sphi 0, %s155
    %s159 = sphi 0, %s158
    %s175 = sphi 0, %s159
    %s181 = sphi 0, %s183
    %s184 = sphi 0, %s181
    %s185 = sphi 0, %s184
    %s201 = sphi 0, %s185
    %s207 = sphi 0, %s209
    %s210 = sphi 0, %s207
    %s211 = sphi 0, %s210
    %s227 = sphi 0, %s211
  $region4: #{tpu_custom_call.1} parent=0 // loop_header_branch
    %17 = sbr.rel (%p15) target = $region8
  $region5: #{tpu_custom_call.1} parent=0 // loop_body
    %s19 = ssub.s32 %s14, 1
    %s20 = ssub.s32 %s14, 2
    %s21 = sadd.s32 %s14, 1
    %s22 = ssub.s32 %s14, %s21
    %p23 = scmp.eq.s32.totalorder %s22, 0
    %s25 = sadd.s32 %s24, 1
    %s26 = scalar_select %p23, %s24, %s25
    %p29 = pneg %p23
    %p30 = scmp.eq.s32.totalorder %s14, 1
    %p31 = por %p29, %p30
    %p32 = scmp.ne.s32.totalorder %s24, %s27
    %p33 = scmp.eq.s32.totalorder %s14, 0
    %p34 = por %p32, %p33
    %p35 = scmp.ne.s32.totalorder %s24, %s27
    %p36 = scmp.eq.s32.totalorder %s19, 1
    %p37 = por %p35, %p36
    %p38 = scmp.ne.s32.totalorder %s27, %s28
    %p39 = scmp.eq.s32.totalorder %s19, 0
    %p40 = por %p38, %p39
    %p41 = scmp.ne.s32.totalorder %s27, %s28
    %p42 = scmp.eq.s32.totalorder %s20, 1
    %p43 = por %p41, %p42
    %p45 = scmp.ne.s32.totalorder %s28, %s44
    %p46 = scmp.eq.s32.totalorder %s20, 0
    %p47 = por %p45, %p46
    %s49 = sadd.s32 %s48, 1
    %p52 = scmp.eq.s32.totalorder %s14, 1
    %p53 = scmp.ne.s32.totalorder %s48, %s50
    %p54 = scmp.eq.s32.totalorder %s14, 0
    %p55 = por %p53, %p54
    %p56 = scmp.ne.s32.totalorder %s48, %s50
    %p57 = scmp.eq.s32.totalorder %s19, 1
    %p58 = por %p56, %p57
    %p59 = scmp.ne.s32.totalorder %s50, %s51
    %p60 = scmp.eq.s32.totalorder %s19, 0
    %p61 = por %p59, %p60
    %p62 = scmp.ne.s32.totalorder %s50, %s51
    %p63 = scmp.eq.s32.totalorder %s20, 1
    %p64 = por %p62, %p63
    %p66 = scmp.ne.s32.totalorder %s51, %s65
    %p67 = scmp.eq.s32.totalorder %s20, 0
    %p68 = por %p66, %p67
    %s70 = sadd.s32 %s69, 1
    %p73 = scmp.eq.s32.totalorder %s14, 1
    %p74 = scmp.ne.s32.totalorder %s69, %s71
    %p75 = scmp.eq.s32.totalorder %s14, 0
    %p76 = por %p74, %p75
    %p77 = scmp.ne.s32.totalorder %s69, %s71
    %p78 = scmp.eq.s32.totalorder %s19, 1
    %p79 = por %p77, %p78
    %p80 = scmp.ne.s32.totalorder %s71, %s72
    %p81 = scmp.eq.s32.totalorder %s19, 0
    %p82 = por %p80, %p81
    %p83 = scmp.ne.s32.totalorder %s71, %s72
    %p84 = scmp.eq.s32.totalorder %s20, 1
    %p85 = por %p83, %p84
    %p87 = scmp.ne.s32.totalorder %s72, %s86
    %p88 = scmp.eq.s32.totalorder %s20, 0
    %p89 = por %p87, %p88
    %s91 = sadd.s32 %s90, 1
    %p94 = scmp.eq.s32.totalorder %s14, 1
    %p95 = scmp.ne.s32.totalorder %s90, %s92
    %p96 = scmp.eq.s32.totalorder %s14, 0
    %p97 = por %p95, %p96
    %p98 = scmp.ne.s32.totalorder %s90, %s92
    %p99 = scmp.eq.s32.totalorder %s19, 1
    %p100 = por %p98, %p99
    %p101 = scmp.ne.s32.totalorder %s92, %s93
    %p102 = scmp.eq.s32.totalorder %s19, 0
    %p103 = por %p101, %p102
    %p104 = scmp.ne.s32.totalorder %s92, %s93
    %p105 = scmp.eq.s32.totalorder %s20, 1
    %p106 = por %p104, %p105
    %p108 = scmp.ne.s32.totalorder %s93, %s107
    %p109 = scmp.eq.s32.totalorder %s20, 0
    %p110 = por %p108, %p109
    %s112 = sadd.s32 %s111, 1
    %p115 = scmp.eq.s32.totalorder %s14, 1
    %p116 = scmp.ne.s32.totalorder %s111, %s113
    %p117 = scmp.eq.s32.totalorder %s14, 0
    %p118 = por %p116, %p117
    %p119 = scmp.ne.s32.totalorder %s111, %s113
    %p120 = scmp.eq.s32.totalorder %s19, 1
    %p121 = por %p119, %p120
    %p122 = scmp.ne.s32.totalorder %s113, %s114
    %p123 = scmp.eq.s32.totalorder %s19, 0
    %p124 = por %p122, %p123
    %p125 = scmp.ne.s32.totalorder %s113, %s114
    %p126 = scmp.eq.s32.totalorder %s20, 1
    %p127 = por %p125, %p126
    %p129 = scmp.ne.s32.totalorder %s114, %s128
    %p130 = scmp.eq.s32.totalorder %s20, 0
    %p131 = por %p129, %p130
    %s133 = sadd.s32 %s132, 1
    %p136 = scmp.eq.s32.totalorder %s14, 1
    %p137 = scmp.ne.s32.totalorder %s132, %s134
    %p138 = scmp.eq.s32.totalorder %s14, 0
    %p139 = por %p137, %p138
    %p140 = scmp.ne.s32.totalorder %s132, %s134
    %p141 = scmp.eq.s32.totalorder %s19, 1
    %p142 = por %p140, %p141
    %p143 = scmp.ne.s32.totalorder %s134, %s135
    %p144 = scmp.eq.s32.totalorder %s19, 0
    %p145 = por %p143, %p144
    %p146 = scmp.ne.s32.totalorder %s134, %s135
    %p147 = scmp.eq.s32.totalorder %s20, 1
    %p148 = por %p146, %p147
    %p150 = scmp.ne.s32.totalorder %s135, %s149
    %p151 = scmp.eq.s32.totalorder %s20, 0
    %p152 = por %p150, %p151
    %s153 = ssub.s32 %s14, %s21
    %p154 = scmp.eq.s32.totalorder %s153, 0
    %s156 = sadd.s32 %s155, 1
    %s157 = scalar_select %p154, %s155, %s156
    %p160 = pneg %p154
    %p161 = scmp.eq.s32.totalorder %s14, 1
    %p162 = por %p160, %p161
    %p163 = scmp.ne.s32.totalorder %s155, %s158
    %p164 = scmp.eq.s32.totalorder %s14, 0
    %p165 = por %p163, %p164
    %p166 = scmp.ne.s32.totalorder %s155, %s158
    %p167 = scmp.eq.s32.totalorder %s19, 1
    %p168 = por %p166, %p167
    %p169 = scmp.ne.s32.totalorder %s158, %s159
    %p170 = scmp.eq.s32.totalorder %s19, 0
    %p171 = por %p169, %p170
    %p172 = scmp.ne.s32.totalorder %s158, %s159
    %p173 = scmp.eq.s32.totalorder %s20, 1
    %p174 = por %p172, %p173
    %p176 = scmp.ne.s32.totalorder %s159, %s175
    %p177 = scmp.eq.s32.totalorder %s20, 0
    %p178 = por %p176, %p177
    %s179 = ssub.s32 %s14, %s21
    %p180 = scmp.eq.s32.totalorder %s179, 0
    %s182 = sadd.s32 %s181, 1
    %s183 = scalar_select %p180, %s181, %s182
    %p186 = pneg %p180
    %p187 = scmp.eq.s32.totalorder %s14, 1
    %p188 = por %p186, %p187
    %p189 = scmp.ne.s32.totalorder %s181, %s184
    %p190 = scmp.eq.s32.totalorder %s14, 0
    %p191 = por %p189, %p190
    %p192 = scmp.ne.s32.totalorder %s181, %s184
    %p193 = scmp.eq.s32.totalorder %s19, 1
    %p194 = por %p192, %p193
    %p195 = scmp.ne.s32.totalorder %s184, %s185
    %p196 = scmp.eq.s32.totalorder %s19, 0
    %p197 = por %p195, %p196
    %p198 = scmp.ne.s32.totalorder %s184, %s185
    %p199 = scmp.eq.s32.totalorder %s20, 1
    %p200 = por %p198, %p199
    %p202 = scmp.ne.s32.totalorder %s185, %s201
    %p203 = scmp.eq.s32.totalorder %s20, 0
    %p204 = por %p202, %p203
    %s205 = ssub.s32 %s14, %s21
    %p206 = scmp.eq.s32.totalorder %s205, 0
    %s208 = sadd.s32 %s207, 1
    %s209 = scalar_select %p206, %s207, %s208
    %p212 = pneg %p206
    %p213 = scmp.eq.s32.totalorder %s14, 1
    %p214 = por %p212, %p213
    %p215 = scmp.ne.s32.totalorder %s207, %s210
    %p216 = scmp.eq.s32.totalorder %s14, 0
    %p217 = por %p215, %p216
    %p218 = scmp.ne.s32.totalorder %s207, %s210
    %p219 = scmp.eq.s32.totalorder %s19, 1
    %p220 = por %p218, %p219
    %p221 = scmp.ne.s32.totalorder %s210, %s211
    %p222 = scmp.eq.s32.totalorder %s19, 0
    %p223 = por %p221, %p222
    %p224 = scmp.ne.s32.totalorder %s210, %s211
    %p225 = scmp.eq.s32.totalorder %s20, 1
    %p226 = por %p224, %p225
    %p228 = scmp.ne.s32.totalorder %s211, %s227
    %p229 = scmp.eq.s32.totalorder %s20, 0
    %p230 = por %p228, %p229
    %p231 = scmp.le.s32.totalorder 1, %s14
    %p232 = scmp.lt.s32.totalorder %s14, 3
    %p233 = pnand %p231, %p232
    %p234 = pneg %p233
    // Predicated region
    $region9: #{tpu_custom_call.1} parent=5 // pred_check
      _
    $region10: #{tpu_custom_call.1} parent=5 // pred_check_branch
      %236 = sbr.rel (%p233) target = $region12
    $region11: #{tpu_custom_call.1} parent=5 // pred_region
      %s237 = ssub.s32 %s14, 1
      // Predicated region
      $region13: #{tpu_custom_call.1} parent=11 // pred_check
        %p238 = pneg %p61
      $region14: #{tpu_custom_call.1} parent=11 // pred_check_branch
        %240 = sbr.rel (%p238) target = $region16
      $region15: #{tpu_custom_call.1} parent=11 // pred_region
        _
      $region16: #{tpu_custom_call.1} parent=11 // pred_fallthru
        _
      // Predicated region
      $region17: #{tpu_custom_call.1} parent=11 // pred_check
        %p241 = pneg %p82
      $region18: #{tpu_custom_call.1} parent=11 // pred_check_branch
        %243 = sbr.rel (%p241) target = $region20
      $region19: #{tpu_custom_call.1} parent=11 // pred_region
        _
      $region20: #{tpu_custom_call.1} parent=11 // pred_fallthru
        _
      // Predicated region
      $region21: #{tpu_custom_call.1} parent=11 // pred_check
        %p244 = pneg %p103
      $region22: #{tpu_custom_call.1} parent=11 // pred_check_branch
        %246 = sbr.rel (%p244) target = $region24
      $region23: #{tpu_custom_call.1} parent=11 // pred_region
        _
      $region24: #{tpu_custom_call.1} parent=11 // pred_fallthru
        _
      // Predicated region
      $region25: #{tpu_custom_call.1} parent=11 // pred_check
        %p247 = pneg %p124
      $region26: #{tpu_custom_call.1} parent=11 // pred_check_branch
        %249 = sbr.rel (%p247) target = $region28
      $region27: #{tpu_custom_call.1} parent=11 // pred_region
        _
      $region28: #{tpu_custom_call.1} parent=11 // pred_fallthru
        _
      // Predicated region
      $region29: #{tpu_custom_call.1} parent=11 // pred_check
        %p250 = pneg %p145
      $region30: #{tpu_custom_call.1} parent=11 // pred_check_branch
        %252 = sbr.rel (%p250) target = $region32
      $region31: #{tpu_custom_call.1} parent=11 // pred_region
        _
      $region32: #{tpu_custom_call.1} parent=11 // pred_fallthru
        _
    $region12: #{tpu_custom_call.1} parent=5 // pred_fallthru
      _
    %p253 = scmp.lt.s32.totalorder %s14, 2
    // Predicated region
    $region33: #{tpu_custom_call.1} parent=5 // pred_check
      %p254 = pneg %p253
    $region34: #{tpu_custom_call.1} parent=5 // pred_check_branch
      %256 = sbr.rel (%p254) target = $region36
    $region35: #{tpu_custom_call.1} parent=5 // pred_region
      // Predicated region
      $region37: #{tpu_custom_call.1} parent=35 // pred_check
        %p257 = pneg %p34
      $region38: #{tpu_custom_call.1} parent=35 // pred_check_branch
        %259 = sbr.rel (%p257) target = $region40
      $region39: #{tpu_custom_call.1} parent=35 // pred_region
        %p260 = scmp.lt.s32.totalorder %s14, 1
        %s261 = scalar_select %p260, %s14, 1
        %s262 = smul.addr %s261, 32
        %s263 = smul.addr %s262, 8
        %s264 = scalar_lea.vmem %s0, %s263
      $region40: #{tpu_custom_call.1} parent=35 // pred_fallthru
        _
      // Predicated region
      $region41: #{tpu_custom_call.1} parent=35 // pred_check
        %p265 = pneg %p165
      $region42: #{tpu_custom_call.1} parent=35 // pred_check_branch
        %267 = sbr.rel (%p265) target = $region44
      $region43: #{tpu_custom_call.1} parent=35 // pred_region
        %p268 = scmp.lt.s32.totalorder %s14, 1
        %s269 = scalar_select %p268, %s14, 1
        %s270 = scalar_lea.vmem %s6, %s269
      $region44: #{tpu_custom_call.1} parent=35 // pred_fallthru
        _
      // Predicated region
      $region45: #{tpu_custom_call.1} parent=35 // pred_check
        %p271 = pneg %p191
      $region46: #{tpu_custom_call.1} parent=35 // pred_check_branch
        %273 = sbr.rel (%p271) target = $region48
      $region47: #{tpu_custom_call.1} parent=35 // pred_region
        %p274 = scmp.lt.s32.totalorder %s14, 1
        %s275 = scalar_select %p274, %s14, 1
        %s276 = scalar_lea.vmem %s7, %s275
      $region48: #{tpu_custom_call.1} parent=35 // pred_fallthru
        _
    $region36: #{tpu_custom_call.1} parent=5 // pred_fallthru
      _
    %p277 = scmp.le.s32.totalorder 1, %s14
    %p278 = scmp.lt.s32.totalorder %s14, 3
    %p279 = pnand %p277, %p278
    %p280 = pneg %p279
    // Predicated region
    $region49: #{tpu_custom_call.1} parent=5 // pred_check
      _
    $region50: #{tpu_custom_call.1} parent=5 // pred_check_branch
      %282 = sbr.rel (%p279) target = $region52
    $region51: #{tpu_custom_call.1} parent=5 // pred_region
      %s283 = ssub.s32 %s14, 1
      %p284 = scmp.lt.s32.totalorder %s19, 1
      %s285 = scalar_select %p284, %s19, 1
      %s286 = smul.addr %s285, 32
      %s287 = smul.addr %s286, 8
      %s288 = scalar_lea.vmem %s0, %s287
      %p289 = pneg %p40
      %p290 = pneg %p37
      %p291 = pneg %p61
      %p292 = pneg %p58
      %p293 = pneg %p82
      %p294 = pneg %p79
      %p295 = pneg %p103
      %p296 = pneg %p100
      %p297 = pneg %p124
      %p298 = pneg %p121
      %p299 = pneg %p145
      %p300 = pneg %p142
      %p301 = scmp.lt.s32.totalorder %s19, 1
      %s302 = scalar_select %p301, %s19, 1
      %s303 = scalar_lea.vmem %s6, %s302
      %p304 = pneg %p171
      %p305 = pneg %p168
      %p306 = scmp.lt.s32.totalorder %s19, 1
      %s307 = scalar_select %p306, %s19, 1
      %s308 = scalar_lea.vmem %s7, %s307
      %p309 = pneg %p197
      %p310 = pneg %p194
      %p311 = pneg %p223
      %p312 = pneg %p220
      %p313 = scmp.lt.s32.totalorder %s19, 1
      %s314 = scalar_select %p313, %s19, 1
      %s315 = smul.addr %s314, 32
      %s316 = smul.addr %s315, 8
      %s317 = scalar_lea.vmem %s8, %s316
      %p318 = scmp.lt.s32.totalorder %s19, 1
      %s319 = scalar_select %p318, %s19, 1
      %s320 = smul.addr %s319, 32
      %s321 = smul.addr %s320, 8
      %s322 = scalar_lea.vmem %s0, %s321
      %p323 = scmp.lt.s32.totalorder %s19, 1
      %s324 = scalar_select %p323, %s19, 1
      %s325 = scalar_lea.vmem %s6, %s324
      %p326 = scmp.lt.s32.totalorder %s19, 1
      %s327 = scalar_select %p326, %s19, 1
      %s328 = scalar_lea.vmem %s7, %s327
      %p329 = scmp.lt.s32.totalorder %s19, 1
      %s330 = scalar_select %p329, %s19, 1
      %s331 = smul.addr %s330, 32
      %s332 = smul.addr %s331, 8
      %s333 = scalar_lea.vmem %s8, %s332
      %vm335 = vcmask 31744
      %336 = vst.msk [vmem:[#allocation2] sm:$0xff] %vm335, 0.0
      %337 = vst.msk [vmem:[#allocation2 + $0x8] sm:$0xff] %vm335, 0.0
      %vm338 = vcmask 25600
      %339 = vst.msk [vmem:[#allocation2 + $0x10] sm:$0x3] %vm338, 0.0
      %340 = vst.msk [vmem:[#allocation2 + $0x18] sm:$0xff] %vm335, 0.0
      %341 = vst.msk [vmem:[#allocation2 + $0x20] sm:$0xff] %vm335, 0.0
      %342 = vst.msk [vmem:[#allocation2 + $0x28] sm:$0x3] %vm338, 0.0
      %343 = vst.msk [vmem:[#allocation2 + $0x30] sm:$0xff] %vm335, 0.0
      %344 = vst.msk [vmem:[#allocation2 + $0x38] sm:$0xff] %vm335, 0.0
      %345 = vst.msk [vmem:[#allocation2 + $0x40] sm:$0x3] %vm338, 0.0
      %346 = vst.msk [vmem:[#allocation2 + $0x48] sm:$0xff] %vm335, 0.0
      %347 = vst.msk [vmem:[#allocation2 + $0x50] sm:$0xff] %vm335, 0.0
      %348 = vst.msk [vmem:[#allocation2 + $0x58] sm:$0x3] %vm338, 0.0
      %349 = vst.msk [vmem:[#allocation2 + $0x60] sm:$0xff] %vm335, 0.0
      %350 = vst.msk [vmem:[#allocation2 + $0x68] sm:$0xff] %vm335, 0.0
      %351 = vst.msk [vmem:[#allocation2 + $0x70] sm:$0x3] %vm338, 0.0
      %352 = vst.msk [vmem:[#allocation2 + $0x78] sm:$0xff] %vm335, 0.0
      %353 = vst.msk [vmem:[#allocation2 + $0x80] sm:$0xff] %vm335, 0.0
      %354 = vst.msk [vmem:[#allocation2 + $0x88] sm:$0x3] %vm338, 0.0
      %355 = vst.msk [vmem:[#allocation2 + $0x90] sm:$0xff] %vm335, 0.0
      %356 = vst.msk [vmem:[#allocation2 + $0x98] sm:$0xff] %vm335, 0.0
      %357 = vst.msk [vmem:[#allocation2 + $0xa0] sm:$0x3] %vm338, 0.0
      %358 = vst.msk [vmem:[#allocation2 + $0xa8] sm:$0xff] %vm335, 0.0
      %359 = vst.msk [vmem:[#allocation2 + $0xb0] sm:$0xff] %vm335, 0.0
      %360 = vst.msk [vmem:[#allocation2 + $0xb8] sm:$0x3] %vm338, 0.0
      %361 = vst.msk [vmem:[#allocation2 + $0xc0] sm:$0xff] %vm335, 0.0
      %362 = vst.msk [vmem:[#allocation2 + $0xc8] sm:$0xff] %vm335, 0.0
      %363 = vst.msk [vmem:[#allocation2 + $0xd0] sm:$0x3] %vm338, 0.0
      %364 = vst.msk [vmem:[#allocation2 + $0xd8] sm:$0xff] %vm335, 0.0
      %365 = vst.msk [vmem:[#allocation2 + $0xe0] sm:$0xff] %vm335, 0.0
      %366 = vst.msk [vmem:[#allocation2 + $0xe8] sm:$0x3] %vm338, 0.0
      %367 = vst.msk [vmem:[#allocation2 + $0xf0] sm:$0xff] %vm335, 0.0
      %368 = vst.msk [vmem:[#allocation2 + $0xf8] sm:$0xff] %vm335, 0.0
      %369 = vst.msk [vmem:[#allocation2 + $0x100] sm:$0x3] %vm338, 0.0
      %370 = vst.msk [vmem:[#allocation2 + $0x108] sm:$0xff] %vm335, 0.0
      %371 = vst.msk [vmem:[#allocation2 + $0x110] sm:$0xff] %vm335, 0.0
      %372 = vst.msk [vmem:[#allocation2 + $0x118] sm:$0x3] %vm338, 0.0
      %373 = vst.msk [vmem:[#allocation2 + $0x120] sm:$0xff] %vm335, 0.0
      %374 = vst.msk [vmem:[#allocation2 + $0x128] sm:$0xff] %vm335, 0.0
      %375 = vst.msk [vmem:[#allocation2 + $0x130] sm:$0x3] %vm338, 0.0
      %376 = vst.msk [vmem:[#allocation2 + $0x138] sm:$0xff] %vm335, 0.0
      %377 = vst.msk [vmem:[#allocation2 + $0x140] sm:$0xff] %vm335, 0.0
      %378 = vst.msk [vmem:[#allocation2 + $0x148] sm:$0x3] %vm338, 0.0
      %379 = vst.msk [vmem:[#allocation2 + $0x150] sm:$0xff] %vm335, 0.0
      %380 = vst.msk [vmem:[#allocation2 + $0x158] sm:$0xff] %vm335, 0.0
      %381 = vst.msk [vmem:[#allocation2 + $0x160] sm:$0x3] %vm338, 0.0
      %382 = vst.msk [vmem:[#allocation2 + $0x168] sm:$0xff] %vm335, 0.0
      %383 = vst.msk [vmem:[#allocation2 + $0x170] sm:$0xff] %vm335, 0.0
      %384 = vst.msk [vmem:[#allocation2 + $0x178] sm:$0x3] %vm338, 0.0
      %385 = vst.msk [vmem:[#allocation2 + $0x180] sm:$0xff] %vm335, 0.0
      %386 = vst.msk [vmem:[#allocation2 + $0x188] sm:$0xff] %vm335, 0.0
      %387 = vst.msk [vmem:[#allocation2 + $0x190] sm:$0x3] %vm338, 0.0
      %388 = vst.msk [vmem:[#allocation2 + $0x198] sm:$0xff] %vm335, 0.0
      %389 = vst.msk [vmem:[#allocation2 + $0x1a0] sm:$0xff] %vm335, 0.0
      %390 = vst.msk [vmem:[#allocation2 + $0x1a8] sm:$0x3] %vm338, 0.0
      %v391 = vld [vmem:[%s322] sm:$0xff]
      %v392 = vld [vmem:[%s322 + $0x8] sm:$0xff]
      %v393 = vld [vmem:[%s322 + $0x10] sm:$0xff]
      %v394 = vld [vmem:[%s322 + $0x18] sm:$0xff]
      %v395 = vld [vmem:[%s322 + $0x20] sm:$0xff]
      %v396 = vld [vmem:[%s322 + $0x28] sm:$0xff]
      %v397 = vld [vmem:[%s322 + $0x30] sm:$0xff]
      %v398 = vld [vmem:[%s322 + $0x38] sm:$0xff]
      %v399 = vld [vmem:[%s322 + $0x40] sm:$0xff]
      %v400 = vld [vmem:[%s322 + $0x48] sm:$0xff]
      %v401 = vld [vmem:[%s322 + $0x50] sm:$0xff]
      %v402 = vld [vmem:[%s322 + $0x58] sm:$0xff]
      %v403 = vld [vmem:[%s322 + $0x60] sm:$0xff]
      %v404 = vld [vmem:[%s322 + $0x68] sm:$0xff]
      %v405 = vld [vmem:[%s322 + $0x70] sm:$0xff]
      %v406 = vld [vmem:[%s322 + $0x78] sm:$0xff]
      %v407 = vld [vmem:[%s322 + $0x80] sm:$0xff]
      %v408 = vld [vmem:[%s322 + $0x88] sm:$0xff]
      %v409 = vld [vmem:[%s322 + $0x90] sm:$0xff]
      %v410 = vld [vmem:[%s322 + $0x98] sm:$0xff]
      %v411 = vld [vmem:[%s322 + $0xa0] sm:$0xff]
      %v412 = vld [vmem:[%s322 + $0xa8] sm:$0xff]
      %v413 = vld [vmem:[%s322 + $0xb0] sm:$0xff]
      %v414 = vld [vmem:[%s322 + $0xb8] sm:$0xff]
      %v415 = vld [vmem:[%s322 + $0xc0] sm:$0xff]
      %v416 = vld [vmem:[%s322 + $0xc8] sm:$0xff]
      %v417 = vld [vmem:[%s322 + $0xd0] sm:$0xff]
      %v418 = vld [vmem:[%s322 + $0xd8] sm:$0xff]
      %v419 = vld [vmem:[%s322 + $0xe0] sm:$0xff]
      %v420 = vld [vmem:[%s322 + $0xe8] sm:$0xff]
      %v421 = vld [vmem:[%s322 + $0xf0] sm:$0xff]
      %v422 = vld [vmem:[%s322 + $0xf8] sm:$0xff]
      %s423 = scalar_lea.vmem [#allocation2], 24
      %424 = vst.msk [vmem:[%s423 + $0x1] sm:$0xff] %vm335, %v391
      %425 = vst.msk [vmem:[%s423 + $0x9] sm:$0xff] %vm335, %v392
      %426 = vst.msk [vmem:[%s423 + $0x19] sm:$0xff] %vm335, %v393
      %427 = vst.msk [vmem:[%s423 + $0x21] sm:$0xff] %vm335, %v394
      %428 = vst.msk [vmem:[%s423 + $0x31] sm:$0xff] %vm335, %v395
      %429 = vst.msk [vmem:[%s423 + $0x39] sm:$0xff] %vm335, %v396
      %430 = vst.msk [vmem:[%s423 + $0x49] sm:$0xff] %vm335, %v397
      %431 = vst.msk [vmem:[%s423 + $0x51] sm:$0xff] %vm335, %v398
      %432 = vst.msk [vmem:[%s423 + $0x61] sm:$0xff] %vm335, %v399
      %433 = vst.msk [vmem:[%s423 + $0x69] sm:$0xff] %vm335, %v400
      %434 = vst.msk [vmem:[%s423 + $0x79] sm:$0xff] %vm335, %v401
      %435 = vst.msk [vmem:[%s423 + $0x81] sm:$0xff] %vm335, %v402
      %436 = vst.msk [vmem:[%s423 + $0x91] sm:$0xff] %vm335, %v403
      %437 = vst.msk [vmem:[%s423 + $0x99] sm:$0xff] %vm335, %v404
      %438 = vst.msk [vmem:[%s423 + $0xa9] sm:$0xff] %vm335, %v405
      %439 = vst.msk [vmem:[%s423 + $0xb1] sm:$0xff] %vm335, %v406
      %440 = vst.msk [vmem:[%s423 + $0xc1] sm:$0xff] %vm335, %v407
      %441 = vst.msk [vmem:[%s423 + $0xc9] sm:$0xff] %vm335, %v408
      %442 = vst.msk [vmem:[%s423 + $0xd9] sm:$0xff] %vm335, %v409
      %443 = vst.msk [vmem:[%s423 + $0xe1] sm:$0xff] %vm335, %v410
      %444 = vst.msk [vmem:[%s423 + $0xf1] sm:$0xff] %vm335, %v411
      %445 = vst.msk [vmem:[%s423 + $0xf9] sm:$0xff] %vm335, %v412
      %446 = vst.msk [vmem:[%s423 + $0x109] sm:$0xff] %vm335, %v413
      %447 = vst.msk [vmem:[%s423 + $0x111] sm:$0xff] %vm335, %v414
      %448 = vst.msk [vmem:[%s423 + $0x121] sm:$0xff] %vm335, %v415
      %449 = vst.msk [vmem:[%s423 + $0x129] sm:$0xff] %vm335, %v416
      %450 = vst.msk [vmem:[%s423 + $0x139] sm:$0xff] %vm335, %v417
      %451 = vst.msk [vmem:[%s423 + $0x141] sm:$0xff] %vm335, %v418
      %452 = vst.msk [vmem:[%s423 + $0x151] sm:$0xff] %vm335, %v419
      %453 = vst.msk [vmem:[%s423 + $0x159] sm:$0xff] %vm335, %v420
      %454 = vst.msk [vmem:[%s423 + $0x169] sm:$0xff] %vm335, %v421
      %455 = vst.msk [vmem:[%s423 + $0x171] sm:$0xff] %vm335, %v422
      %v456 = vld [vmem:[#allocation2] sm:$0xff]
      %v457 = vld [vmem:[#allocation2 + $0x8] sm:$0xff]
      %v458 = vld [vmem:[#allocation2 + $0x18] sm:$0xff]
      %v459 = vld [vmem:[#allocation2 + $0x20] sm:$0xff]
      %v460 = vld [vmem:[#allocation2 + $0x30] sm:$0xff]
      %v461 = vld [vmem:[#allocation2 + $0x38] sm:$0xff]
      %v462 = vld [vmem:[#allocation2 + $0x48] sm:$0xff]
      %v463 = vld [vmem:[#allocation2 + $0x50] sm:$0xff]
      %v464 = vld [vmem:[#allocation2 + $0x60] sm:$0xff]
      %v465 = vld [vmem:[#allocation2 + $0x68] sm:$0xff]
      %v466 = vld [vmem:[#allocation2 + $0x78] sm:$0xff]
      %v467 = vld [vmem:[#allocation2 + $0x80] sm:$0xff]
      %v468 = vld [vmem:[#allocation2 + $0x90] sm:$0xff]
      %v469 = vld [vmem:[#allocation2 + $0x98] sm:$0xff]
      %v470 = vld [vmem:[#allocation2 + $0xa8] sm:$0xff]
      %v471 = vld [vmem:[#allocation2 + $0xb0] sm:$0xff]
      %v472 = vld [vmem:[#allocation2 + $0xc0] sm:$0xff]
      %v473 = vld [vmem:[#allocation2 + $0xc8] sm:$0xff]
      %v474 = vld [vmem:[#allocation2 + $0xd8] sm:$0xff]
      %v475 = vld [vmem:[#allocation2 + $0xe0] sm:$0xff]
      %v476 = vld [vmem:[#allocation2 + $0xf0] sm:$0xff]
      %v477 = vld [vmem:[#allocation2 + $0xf8] sm:$0xff]
      %v478 = vld [vmem:[#allocation2 + $0x108] sm:$0xff]
      %v479 = vld [vmem:[#allocation2 + $0x110] sm:$0xff]
      %v480 = vld [vmem:[#allocation2 + $0x120] sm:$0xff]
      %v481 = vld [vmem:[#allocation2 + $0x128] sm:$0xff]
      %v482 = vld [vmem:[#allocation2 + $0x138] sm:$0xff]
      %v483 = vld [vmem:[#allocation2 + $0x140] sm:$0xff]
      %v484 = vld [vmem:[#allocation2 + $0x150] sm:$0xff]
      %v485 = vld [vmem:[#allocation2 + $0x158] sm:$0xff]
      %v486 = vld [vmem:[#allocation2 + $0x168] sm:$0xff]
      %v487 = vld [vmem:[#allocation2 + $0x170] sm:$0xff]
      %v488 = vld [vmem:[#allocation2 + $0x1] sm:$0xff]
      %v489 = vld [vmem:[#allocation2 + $0x9] sm:$0xff]
      %v490 = vld [vmem:[#allocation2 + $0x19] sm:$0xff]
      %v491 = vld [vmem:[#allocation2 + $0x21] sm:$0xff]
      %v492 = vld [vmem:[#allocation2 + $0x31] sm:$0xff]
      %v493 = vld [vmem:[#allocation2 + $0x39] sm:$0xff]
      %v494 = vld [vmem:[#allocation2 + $0x49] sm:$0xff]
      %v495 = vld [vmem:[#allocation2 + $0x51] sm:$0xff]
      %v496 = vld [vmem:[#allocation2 + $0x61] sm:$0xff]
      %v497 = vld [vmem:[#allocation2 + $0x69] sm:$0xff]
      %v498 = vld [vmem:[#allocation2 + $0x79] sm:$0xff]
      %v499 = vld [vmem:[#allocation2 + $0x81] sm:$0xff]
      %v500 = vld [vmem:[#allocation2 + $0x91] sm:$0xff]
      %v501 = vld [vmem:[#allocation2 + $0x99] sm:$0xff]
      %v502 = vld [vmem:[#allocation2 + $0xa9] sm:$0xff]
      %v503 = vld [vmem:[#allocation2 + $0xb1] sm:$0xff]
      %v504 = vld [vmem:[#allocation2 + $0xc1] sm:$0xff]
      %v505 = vld [vmem:[#allocation2 + $0xc9] sm:$0xff]
      %v506 = vld [vmem:[#allocation2 + $0xd9] sm:$0xff]
      %v507 = vld [vmem:[#allocation2 + $0xe1] sm:$0xff]
      %v508 = vld [vmem:[#allocation2 + $0xf1] sm:$0xff]
      %v509 = vld [vmem:[#allocation2 + $0xf9] sm:$0xff]
      %v510 = vld [vmem:[#allocation2 + $0x109] sm:$0xff]
      %v511 = vld [vmem:[#allocation2 + $0x111] sm:$0xff]
      %v512 = vld [vmem:[#allocation2 + $0x121] sm:$0xff]
      %v513 = vld [vmem:[#allocation2 + $0x129] sm:$0xff]
      %v514 = vld [vmem:[#allocation2 + $0x139] sm:$0xff]
      %v515 = vld [vmem:[#allocation2 + $0x141] sm:$0xff]
      %v516 = vld [vmem:[#allocation2 + $0x151] sm:$0xff]
      %v517 = vld [vmem:[#allocation2 + $0x159] sm:$0xff]
      %v518 = vld [vmem:[#allocation2 + $0x169] sm:$0xff]
      %v519 = vld [vmem:[#allocation2 + $0x171] sm:$0xff]
      %v520 = vld [vmem:[#allocation2 + $0x2] sm:$0xff]
      %v521 = vld [vmem:[#allocation2 + $0xa] sm:$0xff]
      %v522 = vld [vmem:[#allocation2 + $0x1a] sm:$0xff]
      %v523 = vld [vmem:[#allocation2 + $0x22] sm:$0xff]
      %v524 = vld [vmem:[#allocation2 + $0x32] sm:$0xff]
      %v525 = vld [vmem:[#allocation2 + $0x3a] sm:$0xff]
      %v526 = vld [vmem:[#allocation2 + $0x4a] sm:$0xff]
      %v527 = vld [vmem:[#allocation2 + $0x52] sm:$0xff]
      %v528 = vld [vmem:[#allocation2 + $0x62] sm:$0xff]
      %v529 = vld [vmem:[#allocation2 + $0x6a] sm:$0xff]
      %v530 = vld [vmem:[#allocation2 + $0x7a] sm:$0xff]
      %v531 = vld [vmem:[#allocation2 + $0x82] sm:$0xff]
      %v532 = vld [vmem:[#allocation2 + $0x92] sm:$0xff]
      %v533 = vld [vmem:[#allocation2 + $0x9a] sm:$0xff]
      %v534 = vld [vmem:[#allocation2 + $0xaa] sm:$0xff]
      %v535 = vld [vmem:[#allocation2 + $0xb2] sm:$0xff]
      %v536 = vld [vmem:[#allocation2 + $0xc2] sm:$0xff]
      %v537 = vld [vmem:[#allocation2 + $0xca] sm:$0xff]
      %v538 = vld [vmem:[#allocation2 + $0xda] sm:$0xff]
      %v539 = vld [vmem:[#allocation2 + $0xe2] sm:$0xff]
      %v540 = vld [vmem:[#allocation2 + $0xf2] sm:$0xff]
      %v541 = vld [vmem:[#allocation2 + $0xfa] sm:$0xff]
      %v542 = vld [vmem:[#allocation2 + $0x10a] sm:$0xff]
      %v543 = vld [vmem:[#allocation2 + $0x112] sm:$0xff]
      %v544 = vld [vmem:[#allocation2 + $0x122] sm:$0xff]
      %v545 = vld [vmem:[#allocation2 + $0x12a] sm:$0xff]
      %v546 = vld [vmem:[#allocation2 + $0x13a] sm:$0xff]
      %v547 = vld [vmem:[#allocation2 + $0x142] sm:$0xff]
      %v548 = vld [vmem:[#allocation2 + $0x152] sm:$0xff]
      %v549 = vld [vmem:[#allocation2 + $0x15a] sm:$0xff]
      %v550 = vld [vmem:[#allocation2 + $0x16a] sm:$0xff]
      %v551 = vld [vmem:[#allocation2 + $0x172] sm:$0xff]
      %v552 = vld [vmem:[%s423] sm:$0xff]
      %v553 = vld [vmem:[%s423 + $0x8] sm:$0xff]
      %v554 = vld [vmem:[%s423 + $0x18] sm:$0xff]
      %v555 = vld [vmem:[%s423 + $0x20] sm:$0xff]
      %v556 = vld [vmem:[%s423 + $0x30] sm:$0xff]
      %v557 = vld [vmem:[%s423 + $0x38] sm:$0xff]
      %v558 = vld [vmem:[%s423 + $0x48] sm:$0xff]
      %v559 = vld [vmem:[%s423 + $0x50] sm:$0xff]
      %v560 = vld [vmem:[%s423 + $0x60] sm:$0xff]
      %v561 = vld [vmem:[%s423 + $0x68] sm:$0xff]
      %v562 = vld [vmem:[%s423 + $0x78] sm:$0xff]
      %v563 = vld [vmem:[%s423 + $0x80] sm:$0xff]
      %v564 = vld [vmem:[%s423 + $0x90] sm:$0xff]
      %v565 = vld [vmem:[%s423 + $0x98] sm:$0xff]
      %v566 = vld [vmem:[%s423 + $0xa8] sm:$0xff]
      %v567 = vld [vmem:[%s423 + $0xb0] sm:$0xff]
      %v568 = vld [vmem:[%s423 + $0xc0] sm:$0xff]
      %v569 = vld [vmem:[%s423 + $0xc8] sm:$0xff]
      %v570 = vld [vmem:[%s423 + $0xd8] sm:$0xff]
      %v571 = vld [vmem:[%s423 + $0xe0] sm:$0xff]
      %v572 = vld [vmem:[%s423 + $0xf0] sm:$0xff]
      %v573 = vld [vmem:[%s423 + $0xf8] sm:$0xff]
      %v574 = vld [vmem:[%s423 + $0x108] sm:$0xff]
      %v575 = vld [vmem:[%s423 + $0x110] sm:$0xff]
      %v576 = vld [vmem:[%s423 + $0x120] sm:$0xff]
      %v577 = vld [vmem:[%s423 + $0x128] sm:$0xff]
      %v578 = vld [vmem:[%s423 + $0x138] sm:$0xff]
      %v579 = vld [vmem:[%s423 + $0x140] sm:$0xff]
      %v580 = vld [vmem:[%s423 + $0x150] sm:$0xff]
      %v581 = vld [vmem:[%s423 + $0x158] sm:$0xff]
      %v582 = vld [vmem:[%s423 + $0x168] sm:$0xff]
      %v583 = vld [vmem:[%s423 + $0x170] sm:$0xff]
      %v584 = vld [vmem:[%s423 + $0x1] sm:$0xff]
      %v585 = vld [vmem:[%s423 + $0x9] sm:$0xff]
      %v586 = vld [vmem:[%s423 + $0x19] sm:$0xff]
      %v587 = vld [vmem:[%s423 + $0x21] sm:$0xff]
      %v588 = vld [vmem:[%s423 + $0x31] sm:$0xff]
      %v589 = vld [vmem:[%s423 + $0x39] sm:$0xff]
      %v590 = vld [vmem:[%s423 + $0x49] sm:$0xff]
      %v591 = vld [vmem:[%s423 + $0x51] sm:$0xff]
      %v592 = vld [vmem:[%s423 + $0x61] sm:$0xff]
      %v593 = vld [vmem:[%s423 + $0x69] sm:$0xff]
      %v594 = vld [vmem:[%s423 + $0x79] sm:$0xff]
      %v595 = vld [vmem:[%s423 + $0x81] sm:$0xff]
      %v596 = vld [vmem:[%s423 + $0x91] sm:$0xff]
      %v597 = vld [vmem:[%s423 + $0x99] sm:$0xff]
      %v598 = vld [vmem:[%s423 + $0xa9] sm:$0xff]
      %v599 = vld [vmem:[%s423 + $0xb1] sm:$0xff]
      %v600 = vld [vmem:[%s423 + $0xc1] sm:$0xff]
      %v601 = vld [vmem:[%s423 + $0xc9] sm:$0xff]
      %v602 = vld [vmem:[%s423 + $0xd9] sm:$0xff]
      %v603 = vld [vmem:[%s423 + $0xe1] sm:$0xff]
      %v604 = vld [vmem:[%s423 + $0xf1] sm:$0xff]
      %v605 = vld [vmem:[%s423 + $0xf9] sm:$0xff]
      %v606 = vld [vmem:[%s423 + $0x109] sm:$0xff]
      %v607 = vld [vmem:[%s423 + $0x111] sm:$0xff]
      %v608 = vld [vmem:[%s423 + $0x121] sm:$0xff]
      %v609 = vld [vmem:[%s423 + $0x129] sm:$0xff]
      %v610 = vld [vmem:[%s423 + $0x139] sm:$0xff]
      %v611 = vld [vmem:[%s423 + $0x141] sm:$0xff]
      %v612 = vld [vmem:[%s423 + $0x151] sm:$0xff]
      %v613 = vld [vmem:[%s423 + $0x159] sm:$0xff]
      %v614 = vld [vmem:[%s423 + $0x169] sm:$0xff]
      %v615 = vld [vmem:[%s423 + $0x171] sm:$0xff]
      %v616 = vld [vmem:[%s423 + $0x2] sm:$0xff]
      %v617 = vld [vmem:[%s423 + $0xa] sm:$0xff]
      %v618 = vld [vmem:[%s423 + $0x1a] sm:$0xff]
      %v619 = vld [vmem:[%s423 + $0x22] sm:$0xff]
      %v620 = vld [vmem:[%s423 + $0x32] sm:$0xff]
      %v621 = vld [vmem:[%s423 + $0x3a] sm:$0xff]
      %v622 = vld [vmem:[%s423 + $0x4a] sm:$0xff]
      %v623 = vld [vmem:[%s423 + $0x52] sm:$0xff]
      %v624 = vld [vmem:[%s423 + $0x62] sm:$0xff]
      %v625 = vld [vmem:[%s423 + $0x6a] sm:$0xff]
      %v626 = vld [vmem:[%s423 + $0x7a] sm:$0xff]
      %v627 = vld [vmem:[%s423 + $0x82] sm:$0xff]
      %v628 = vld [vmem:[%s423 + $0x92] sm:$0xff]
      %v629 = vld [vmem:[%s423 + $0x9a] sm:$0xff]
      %v630 = vld [vmem:[%s423 + $0xaa] sm:$0xff]
      %v631 = vld [vmem:[%s423 + $0xb2] sm:$0xff]
      %v632 = vld [vmem:[%s423 + $0xc2] sm:$0xff]
      %v633 = vld [vmem:[%s423 + $0xca] sm:$0xff]
      %v634 = vld [vmem:[%s423 + $0xda] sm:$0xff]
      %v635 = vld [vmem:[%s423 + $0xe2] sm:$0xff]
      %v636 = vld [vmem:[%s423 + $0xf2] sm:$0xff]
      %v637 = vld [vmem:[%s423 + $0xfa] sm:$0xff]
      %v638 = vld [vmem:[%s423 + $0x10a] sm:$0xff]
      %v639 = vld [vmem:[%s423 + $0x112] sm:$0xff]
      %v640 = vld [vmem:[%s423 + $0x122] sm:$0xff]
      %v641 = vld [vmem:[%s423 + $0x12a] sm:$0xff]
      %v642 = vld [vmem:[%s423 + $0x13a] sm:$0xff]
      %v643 = vld [vmem:[%s423 + $0x142] sm:$0xff]
      %v644 = vld [vmem:[%s423 + $0x152] sm:$0xff]
      %v645 = vld [vmem:[%s423 + $0x15a] sm:$0xff]
      %v646 = vld [vmem:[%s423 + $0x16a] sm:$0xff]
      %v647 = vld [vmem:[%s423 + $0x172] sm:$0xff]
      %s648 = scalar_lea.vmem [#allocation2], 48
      %v649 = vld [vmem:[%s648] sm:$0xff]
      %v650 = vld [vmem:[%s648 + $0x8] sm:$0xff]
      %v651 = vld [vmem:[%s648 + $0x18] sm:$0xff]
      %v652 = vld [vmem:[%s648 + $0x20] sm:$0xff]
      %v653 = vld [vmem:[%s648 + $0x30] sm:$0xff]
      %v654 = vld [vmem:[%s648 + $0x38] sm:$0xff]
      %v655 = vld [vmem:[%s648 + $0x48] sm:$0xff]
      %v656 = vld [vmem:[%s648 + $0x50] sm:$0xff]
      %v657 = vld [vmem:[%s648 + $0x60] sm:$0xff]
      %v658 = vld [vmem:[%s648 + $0x68] sm:$0xff]
      %v659 = vld [vmem:[%s648 + $0x78] sm:$0xff]
      %v660 = vld [vmem:[%s648 + $0x80] sm:$0xff]
      %v661 = vld [vmem:[%s648 + $0x90] sm:$0xff]
      %v662 = vld [vmem:[%s648 + $0x98] sm:$0xff]
      %v663 = vld [vmem:[%s648 + $0xa8] sm:$0xff]
      %v664 = vld [vmem:[%s648 + $0xb0] sm:$0xff]
      %v665 = vld [vmem:[%s648 + $0xc0] sm:$0xff]
      %v666 = vld [vmem:[%s648 + $0xc8] sm:$0xff]
      %v667 = vld [vmem:[%s648 + $0xd8] sm:$0xff]
      %v668 = vld [vmem:[%s648 + $0xe0] sm:$0xff]
      %v669 = vld [vmem:[%s648 + $0xf0] sm:$0xff]
      %v670 = vld [vmem:[%s648 + $0xf8] sm:$0xff]
      %v671 = vld [vmem:[%s648 + $0x108] sm:$0xff]
      %v672 = vld [vmem:[%s648 + $0x110] sm:$0xff]
      %v673 = vld [vmem:[%s648 + $0x120] sm:$0xff]
      %v674 = vld [vmem:[%s648 + $0x128] sm:$0xff]
      %v675 = vld [vmem:[%s648 + $0x138] sm:$0xff]
      %v676 = vld [vmem:[%s648 + $0x140] sm:$0xff]
      %v677 = vld [vmem:[%s648 + $0x150] sm:$0xff]
      %v678 = vld [vmem:[%s648 + $0x158] sm:$0xff]
      %v679 = vld [vmem:[%s648 + $0x168] sm:$0xff]
      %v680 = vld [vmem:[%s648 + $0x170] sm:$0xff]
      %v681 = vld [vmem:[%s648 + $0x1] sm:$0xff]
      %v682 = vld [vmem:[%s648 + $0x9] sm:$0xff]
      %v683 = vld [vmem:[%s648 + $0x19] sm:$0xff]
      %v684 = vld [vmem:[%s648 + $0x21] sm:$0xff]
      %v685 = vld [vmem:[%s648 + $0x31] sm:$0xff]
      %v686 = vld [vmem:[%s648 + $0x39] sm:$0xff]
      %v687 = vld [vmem:[%s648 + $0x49] sm:$0xff]
      %v688 = vld [vmem:[%s648 + $0x51] sm:$0xff]
      %v689 = vld [vmem:[%s648 + $0x61] sm:$0xff]
      %v690 = vld [vmem:[%s648 + $0x69] sm:$0xff]
      %v691 = vld [vmem:[%s648 + $0x79] sm:$0xff]
      %v692 = vld [vmem:[%s648 + $0x81] sm:$0xff]
      %v693 = vld [vmem:[%s648 + $0x91] sm:$0xff]
      %v694 = vld [vmem:[%s648 + $0x99] sm:$0xff]
      %v695 = vld [vmem:[%s648 + $0xa9] sm:$0xff]
      %v696 = vld [vmem:[%s648 + $0xb1] sm:$0xff]
      %v697 = vld [vmem:[%s648 + $0xc1] sm:$0xff]
      %v698 = vld [vmem:[%s648 + $0xc9] sm:$0xff]
      %v699 = vld [vmem:[%s648 + $0xd9] sm:$0xff]
      %v700 = vld [vmem:[%s648 + $0xe1] sm:$0xff]
      %v701 = vld [vmem:[%s648 + $0xf1] sm:$0xff]
      %v702 = vld [vmem:[%s648 + $0xf9] sm:$0xff]
      %v703 = vld [vmem:[%s648 + $0x109] sm:$0xff]
      %v704 = vld [vmem:[%s648 + $0x111] sm:$0xff]
      %v705 = vld [vmem:[%s648 + $0x121] sm:$0xff]
      %v706 = vld [vmem:[%s648 + $0x129] sm:$0xff]
      %v707 = vld [vmem:[%s648 + $0x139] sm:$0xff]
      %v708 = vld [vmem:[%s648 + $0x141] sm:$0xff]
      %v709 = vld [vmem:[%s648 + $0x151] sm:$0xff]
      %v710 = vld [vmem:[%s648 + $0x159] sm:$0xff]
      %v711 = vld [vmem:[%s648 + $0x169] sm:$0xff]
      %v712 = vld [vmem:[%s648 + $0x171] sm:$0xff]
      %v713 = vld [vmem:[%s648 + $0x2] sm:$0xff]
      %v714 = vld [vmem:[%s648 + $0xa] sm:$0xff]
      %v715 = vld [vmem:[%s648 + $0x1a] sm:$0xff]
      %v716 = vld [vmem:[%s648 + $0x22] sm:$0xff]
      %v717 = vld [vmem:[%s648 + $0x32] sm:$0xff]
      %v718 = vld [vmem:[%s648 + $0x3a] sm:$0xff]
      %v719 = vld [vmem:[%s648 + $0x4a] sm:$0xff]
      %v720 = vld [vmem:[%s648 + $0x52] sm:$0xff]
      %v721 = vld [vmem:[%s648 + $0x62] sm:$0xff]
      %v722 = vld [vmem:[%s648 + $0x6a] sm:$0xff]
      %v723 = vld [vmem:[%s648 + $0x7a] sm:$0xff]
      %v724 = vld [vmem:[%s648 + $0x82] sm:$0xff]
      %v725 = vld [vmem:[%s648 + $0x92] sm:$0xff]
      %v726 = vld [vmem:[%s648 + $0x9a] sm:$0xff]
      %v727 = vld [vmem:[%s648 + $0xaa] sm:$0xff]
      %v728 = vld [vmem:[%s648 + $0xb2] sm:$0xff]
      %v729 = vld [vmem:[%s648 + $0xc2] sm:$0xff]
      %v730 = vld [vmem:[%s648 + $0xca] sm:$0xff]
      %v731 = vld [vmem:[%s648 + $0xda] sm:$0xff]
      %v732 = vld [vmem:[%s648 + $0xe2] sm:$0xff]
      %v733 = vld [vmem:[%s648 + $0xf2] sm:$0xff]
      %v734 = vld [vmem:[%s648 + $0xfa] sm:$0xff]
      %v735 = vld [vmem:[%s648 + $0x10a] sm:$0xff]
      %v736 = vld [vmem:[%s648 + $0x112] sm:$0xff]
      %v737 = vld [vmem:[%s648 + $0x122] sm:$0xff]
      %v738 = vld [vmem:[%s648 + $0x12a] sm:$0xff]
      %v739 = vld [vmem:[%s648 + $0x13a] sm:$0xff]
      %v740 = vld [vmem:[%s648 + $0x142] sm:$0xff]
      %v741 = vld [vmem:[%s648 + $0x152] sm:$0xff]
      %v742 = vld [vmem:[%s648 + $0x15a] sm:$0xff]
      %v743 = vld [vmem:[%s648 + $0x16a] sm:$0xff]
      %v744 = vld [vmem:[%s648 + $0x172] sm:$0xff]
      %777 = vrot.lane.b32.xlu0 %v488, 4
      %v778 = vpop.permute.xlu0 %777
      %779 = vrot.lane.b32.xlu0 %v489, 4
      %v780 = vpop.permute.xlu0 %779
      %781 = vrot.lane.b32.xlu0 %v490, 4
      %v782 = vpop.permute.xlu0 %781
      %783 = vrot.lane.b32.xlu0 %v491, 4
      %v784 = vpop.permute.xlu0 %783
      %785 = vrot.lane.b32.xlu0 %v492, 4
      %v786 = vpop.permute.xlu0 %785
      %787 = vrot.lane.b32.xlu0 %v493, 4
      %v788 = vpop.permute.xlu0 %787
      %789 = vrot.lane.b32.xlu0 %v494, 4
      %v790 = vpop.permute.xlu0 %789
      %791 = vrot.lane.b32.xlu0 %v495, 4
      %v792 = vpop.permute.xlu0 %791
      %793 = vrot.lane.b32.xlu0 %v496, 4
      %v794 = vpop.permute.xlu0 %793
      %795 = vrot.lane.b32.xlu0 %v497, 4
      %v796 = vpop.permute.xlu0 %795
      %797 = vrot.lane.b32.xlu0 %v498, 4
      %v798 = vpop.permute.xlu0 %797
      %799 = vrot.lane.b32.xlu0 %v499, 4
      %v800 = vpop.permute.xlu0 %799
      %801 = vrot.lane.b32.xlu0 %v500, 4
      %v802 = vpop.permute.xlu0 %801
      %803 = vrot.lane.b32.xlu0 %v501, 4
      %v804 = vpop.permute.xlu0 %803
      %805 = vrot.lane.b32.xlu0 %v502, 4
      %v806 = vpop.permute.xlu0 %805
      %807 = vrot.lane.b32.xlu0 %v503, 4
      %v808 = vpop.permute.xlu0 %807
      %809 = vrot.lane.b32.xlu0 %v504, 4
      %v810 = vpop.permute.xlu0 %809
      %811 = vrot.lane.b32.xlu0 %v505, 4
      %v812 = vpop.permute.xlu0 %811
      %813 = vrot.lane.b32.xlu0 %v506, 4
      %v814 = vpop.permute.xlu0 %813
      %815 = vrot.lane.b32.xlu0 %v507, 4
      %v816 = vpop.permute.xlu0 %815
      %817 = vrot.lane.b32.xlu0 %v508, 4
      %v818 = vpop.permute.xlu0 %817
      %819 = vrot.lane.b32.xlu0 %v509, 4
      %v820 = vpop.permute.xlu0 %819
      %821 = vrot.lane.b32.xlu0 %v510, 4
      %v822 = vpop.permute.xlu0 %821
      %823 = vrot.lane.b32.xlu0 %v511, 4
      %v824 = vpop.permute.xlu0 %823
      %825 = vrot.lane.b32.xlu0 %v512, 4
      %v826 = vpop.permute.xlu0 %825
      %827 = vrot.lane.b32.xlu0 %v513, 4
      %v828 = vpop.permute.xlu0 %827
      %829 = vrot.lane.b32.xlu0 %v514, 4
      %v830 = vpop.permute.xlu0 %829
      %831 = vrot.lane.b32.xlu0 %v515, 4
      %v832 = vpop.permute.xlu0 %831
      %833 = vrot.lane.b32.xlu0 %v516, 4
      %v834 = vpop.permute.xlu0 %833
      %835 = vrot.lane.b32.xlu0 %v517, 4
      %v836 = vpop.permute.xlu0 %835
      %837 = vrot.lane.b32.xlu0 %v518, 4
      %v838 = vpop.permute.xlu0 %837
      %839 = vrot.lane.b32.xlu0 %v519, 4
      %v840 = vpop.permute.xlu0 %839
      %905 = vrot.lane.b32.xlu0 %v520, 8
      %v906 = vpop.permute.xlu0 %905
      %907 = vrot.lane.b32.xlu0 %v521, 8
      %v908 = vpop.permute.xlu0 %907
      %909 = vrot.lane.b32.xlu0 %v522, 8
      %v910 = vpop.permute.xlu0 %909
      %911 = vrot.lane.b32.xlu0 %v523, 8
      %v912 = vpop.permute.xlu0 %911
      %913 = vrot.lane.b32.xlu0 %v524, 8
      %v914 = vpop.permute.xlu0 %913
      %915 = vrot.lane.b32.xlu0 %v525, 8
      %v916 = vpop.permute.xlu0 %915
      %917 = vrot.lane.b32.xlu0 %v526, 8
      %v918 = vpop.permute.xlu0 %917
      %919 = vrot.lane.b32.xlu0 %v527, 8
      %v920 = vpop.permute.xlu0 %919
      %921 = vrot.lane.b32.xlu0 %v528, 8
      %v922 = vpop.permute.xlu0 %921
      %923 = vrot.lane.b32.xlu0 %v529, 8
      %v924 = vpop.permute.xlu0 %923
      %925 = vrot.lane.b32.xlu0 %v530, 8
      %v926 = vpop.permute.xlu0 %925
      %927 = vrot.lane.b32.xlu0 %v531, 8
      %v928 = vpop.permute.xlu0 %927
      %929 = vrot.lane.b32.xlu0 %v532, 8
      %v930 = vpop.permute.xlu0 %929
      %931 = vrot.lane.b32.xlu0 %v533, 8
      %v932 = vpop.permute.xlu0 %931
      %933 = vrot.lane.b32.xlu0 %v534, 8
      %v934 = vpop.permute.xlu0 %933
      %935 = vrot.lane.b32.xlu0 %v535, 8
      %v936 = vpop.permute.xlu0 %935
      %937 = vrot.lane.b32.xlu0 %v536, 8
      %v938 = vpop.permute.xlu0 %937
      %939 = vrot.lane.b32.xlu0 %v537, 8
      %v940 = vpop.permute.xlu0 %939
      %941 = vrot.lane.b32.xlu0 %v538, 8
      %v942 = vpop.permute.xlu0 %941
      %943 = vrot.lane.b32.xlu0 %v539, 8
      %v944 = vpop.permute.xlu0 %943
      %945 = vrot.lane.b32.xlu0 %v540, 8
      %v946 = vpop.permute.xlu0 %945
      %947 = vrot.lane.b32.xlu0 %v541, 8
      %v948 = vpop.permute.xlu0 %947
      %949 = vrot.lane.b32.xlu0 %v542, 8
      %v950 = vpop.permute.xlu0 %949
      %951 = vrot.lane.b32.xlu0 %v543, 8
      %v952 = vpop.permute.xlu0 %951
      %953 = vrot.lane.b32.xlu0 %v544, 8
      %v954 = vpop.permute.xlu0 %953
      %955 = vrot.lane.b32.xlu0 %v545, 8
      %v956 = vpop.permute.xlu0 %955
      %957 = vrot.lane.b32.xlu0 %v546, 8
      %v958 = vpop.permute.xlu0 %957
      %959 = vrot.lane.b32.xlu0 %v547, 8
      %v960 = vpop.permute.xlu0 %959
      %961 = vrot.lane.b32.xlu0 %v548, 8
      %v962 = vpop.permute.xlu0 %961
      %963 = vrot.lane.b32.xlu0 %v549, 8
      %v964 = vpop.permute.xlu0 %963
      %965 = vrot.lane.b32.xlu0 %v550, 8
      %v966 = vpop.permute.xlu0 %965
      %967 = vrot.lane.b32.xlu0 %v551, 8
      %v968 = vpop.permute.xlu0 %967
      %1033 = vrot.lane.b32.xlu0 %v552, 12
      %v1034 = vpop.permute.xlu0 %1033
      %1035 = vrot.lane.b32.xlu0 %v553, 12
      %v1036 = vpop.permute.xlu0 %1035
      %1037 = vrot.lane.b32.xlu0 %v554, 12
      %v1038 = vpop.permute.xlu0 %1037
      %1039 = vrot.lane.b32.xlu0 %v555, 12
      %v1040 = vpop.permute.xlu0 %1039
      %1041 = vrot.lane.b32.xlu0 %v556, 12
      %v1042 = vpop.permute.xlu0 %1041
      %1043 = vrot.lane.b32.xlu0 %v557, 12
      %v1044 = vpop.permute.xlu0 %1043
      %1045 = vrot.lane.b32.xlu0 %v558, 12
      %v1046 = vpop.permute.xlu0 %1045
      %1047 = vrot.lane.b32.xlu0 %v559, 12
      %v1048 = vpop.permute.xlu0 %1047
      %1049 = vrot.lane.b32.xlu0 %v560, 12
      %v1050 = vpop.permute.xlu0 %1049
      %1051 = vrot.lane.b32.xlu0 %v561, 12
      %v1052 = vpop.permute.xlu0 %1051
      %1053 = vrot.lane.b32.xlu0 %v562, 12
      %v1054 = vpop.permute.xlu0 %1053
      %1055 = vrot.lane.b32.xlu0 %v563, 12
      %v1056 = vpop.permute.xlu0 %1055
      %1057 = vrot.lane.b32.xlu0 %v564, 12
      %v1058 = vpop.permute.xlu0 %1057
      %1059 = vrot.lane.b32.xlu0 %v565, 12
      %v1060 = vpop.permute.xlu0 %1059
      %1061 = vrot.lane.b32.xlu0 %v566, 12
      %v1062 = vpop.permute.xlu0 %1061
      %1063 = vrot.lane.b32.xlu0 %v567, 12
      %v1064 = vpop.permute.xlu0 %1063
      %1065 = vrot.lane.b32.xlu0 %v568, 12
      %v1066 = vpop.permute.xlu0 %1065
      %1067 = vrot.lane.b32.xlu0 %v569, 12
      %v1068 = vpop.permute.xlu0 %1067
      %1069 = vrot.lane.b32.xlu0 %v570, 12
      %v1070 = vpop.permute.xlu0 %1069
      %1071 = vrot.lane.b32.xlu0 %v571, 12
      %v1072 = vpop.permute.xlu0 %1071
      %1073 = vrot.lane.b32.xlu0 %v572, 12
      %v1074 = vpop.permute.xlu0 %1073
      %1075 = vrot.lane.b32.xlu0 %v573, 12
      %v1076 = vpop.permute.xlu0 %1075
      %1077 = vrot.lane.b32.xlu0 %v574, 12
      %v1078 = vpop.permute.xlu0 %1077
      %1079 = vrot.lane.b32.xlu0 %v575, 12
      %v1080 = vpop.permute.xlu0 %1079
      %1081 = vrot.lane.b32.xlu0 %v576, 12
      %v1082 = vpop.permute.xlu0 %1081
      %1083 = vrot.lane.b32.xlu0 %v577, 12
      %v1084 = vpop.permute.xlu0 %1083
      %1085 = vrot.lane.b32.xlu0 %v578, 12
      %v1086 = vpop.permute.xlu0 %1085
      %1087 = vrot.lane.b32.xlu0 %v579, 12
      %v1088 = vpop.permute.xlu0 %1087
      %1089 = vrot.lane.b32.xlu0 %v580, 12
      %v1090 = vpop.permute.xlu0 %1089
      %1091 = vrot.lane.b32.xlu0 %v581, 12
      %v1092 = vpop.permute.xlu0 %1091
      %1093 = vrot.lane.b32.xlu0 %v582, 12
      %v1094 = vpop.permute.xlu0 %1093
      %1095 = vrot.lane.b32.xlu0 %v583, 12
      %v1096 = vpop.permute.xlu0 %1095
      %1161 = vrot.lane.b32.xlu0 %v584, 16
      %v1162 = vpop.permute.xlu0 %1161
      %1163 = vrot.lane.b32.xlu0 %v585, 16
      %v1164 = vpop.permute.xlu0 %1163
      %1165 = vrot.lane.b32.xlu0 %v586, 16
      %v1166 = vpop.permute.xlu0 %1165
      %1167 = vrot.lane.b32.xlu0 %v587, 16
      %v1168 = vpop.permute.xlu0 %1167
      %1169 = vrot.lane.b32.xlu0 %v588, 16
      %v1170 = vpop.permute.xlu0 %1169
      %1171 = vrot.lane.b32.xlu0 %v589, 16
      %v1172 = vpop.permute.xlu0 %1171
      %1173 = vrot.lane.b32.xlu0 %v590, 16
      %v1174 = vpop.permute.xlu0 %1173
      %1175 = vrot.lane.b32.xlu0 %v591, 16
      %v1176 = vpop.permute.xlu0 %1175
      %1177 = vrot.lane.b32.xlu0 %v592, 16
      %v1178 = vpop.permute.xlu0 %1177
      %1179 = vrot.lane.b32.xlu0 %v593, 16
      %v1180 = vpop.permute.xlu0 %1179
      %1181 = vrot.lane.b32.xlu0 %v594, 16
      %v1182 = vpop.permute.xlu0 %1181
      %1183 = vrot.lane.b32.xlu0 %v595, 16
      %v1184 = vpop.permute.xlu0 %1183
      %1185 = vrot.lane.b32.xlu0 %v596, 16
      %v1186 = vpop.permute.xlu0 %1185
      %1187 = vrot.lane.b32.xlu0 %v597, 16
      %v1188 = vpop.permute.xlu0 %1187
      %1189 = vrot.lane.b32.xlu0 %v598, 16
      %v1190 = vpop.permute.xlu0 %1189
      %1191 = vrot.lane.b32.xlu0 %v599, 16
      %v1192 = vpop.permute.xlu0 %1191
      %1193 = vrot.lane.b32.xlu0 %v600, 16
      %v1194 = vpop.permute.xlu0 %1193
      %1195 = vrot.lane.b32.xlu0 %v601, 16
      %v1196 = vpop.permute.xlu0 %1195
      %1197 = vrot.lane.b32.xlu0 %v602, 16
      %v1198 = vpop.permute.xlu0 %1197
      %1199 = vrot.lane.b32.xlu0 %v603, 16
      %v1200 = vpop.permute.xlu0 %1199
      %1201 = vrot.lane.b32.xlu0 %v604, 16
      %v1202 = vpop.permute.xlu0 %1201
      %1203 = vrot.lane.b32.xlu0 %v605, 16
      %v1204 = vpop.permute.xlu0 %1203
      %1205 = vrot.lane.b32.xlu0 %v606, 16
      %v1206 = vpop.permute.xlu0 %1205
      %1207 = vrot.lane.b32.xlu0 %v607, 16
      %v1208 = vpop.permute.xlu0 %1207
      %1209 = vrot.lane.b32.xlu0 %v608, 16
      %v1210 = vpop.permute.xlu0 %1209
      %1211 = vrot.lane.b32.xlu0 %v609, 16
      %v1212 = vpop.permute.xlu0 %1211
      %1213 = vrot.lane.b32.xlu0 %v610, 16
      %v1214 = vpop.permute.xlu0 %1213
      %1215 = vrot.lane.b32.xlu0 %v611, 16
      %v1216 = vpop.permute.xlu0 %1215
      %1217 = vrot.lane.b32.xlu0 %v612, 16
      %v1218 = vpop.permute.xlu0 %1217
      %1219 = vrot.lane.b32.xlu0 %v613, 16
      %v1220 = vpop.permute.xlu0 %1219
      %1221 = vrot.lane.b32.xlu0 %v614, 16
      %v1222 = vpop.permute.xlu0 %1221
      %1223 = vrot.lane.b32.xlu0 %v615, 16
      %v1224 = vpop.permute.xlu0 %1223
      %1289 = vrot.lane.b32.xlu0 %v616, 20
      %v1290 = vpop.permute.xlu0 %1289
      %1291 = vrot.lane.b32.xlu0 %v617, 20
      %v1292 = vpop.permute.xlu0 %1291
      %1293 = vrot.lane.b32.xlu0 %v618, 20
      %v1294 = vpop.permute.xlu0 %1293
      %1295 = vrot.lane.b32.xlu0 %v619, 20
      %v1296 = vpop.permute.xlu0 %1295
      %1297 = vrot.lane.b32.xlu0 %v620, 20
      %v1298 = vpop.permute.xlu0 %1297
      %1299 = vrot.lane.b32.xlu0 %v621, 20
      %v1300 = vpop.permute.xlu0 %1299
      %1301 = vrot.lane.b32.xlu0 %v622, 20
      %v1302 = vpop.permute.xlu0 %1301
      %1303 = vrot.lane.b32.xlu0 %v623, 20
      %v1304 = vpop.permute.xlu0 %1303
      %1305 = vrot.lane.b32.xlu0 %v624, 20
      %v1306 = vpop.permute.xlu0 %1305
      %1307 = vrot.lane.b32.xlu0 %v625, 20
      %v1308 = vpop.permute.xlu0 %1307
      %1309 = vrot.lane.b32.xlu0 %v626, 20
      %v1310 = vpop.permute.xlu0 %1309
      %1311 = vrot.lane.b32.xlu0 %v627, 20
      %v1312 = vpop.permute.xlu0 %1311
      %1313 = vrot.lane.b32.xlu0 %v628, 20
      %v1314 = vpop.permute.xlu0 %1313
      %1315 = vrot.lane.b32.xlu0 %v629, 20
      %v1316 = vpop.permute.xlu0 %1315
      %1317 = vrot.lane.b32.xlu0 %v630, 20
      %v1318 = vpop.permute.xlu0 %1317
      %1319 = vrot.lane.b32.xlu0 %v631, 20
      %v1320 = vpop.permute.xlu0 %1319
      %1321 = vrot.lane.b32.xlu0 %v632, 20
      %v1322 = vpop.permute.xlu0 %1321
      %1323 = vrot.lane.b32.xlu0 %v633, 20
      %v1324 = vpop.permute.xlu0 %1323
      %1325 = vrot.lane.b32.xlu0 %v634, 20
      %v1326 = vpop.permute.xlu0 %1325
      %1327 = vrot.lane.b32.xlu0 %v635, 20
      %v1328 = vpop.permute.xlu0 %1327
      %1329 = vrot.lane.b32.xlu0 %v636, 20
      %v1330 = vpop.permute.xlu0 %1329
      %1331 = vrot.lane.b32.xlu0 %v637, 20
      %v1332 = vpop.permute.xlu0 %1331
      %1333 = vrot.lane.b32.xlu0 %v638, 20
      %v1334 = vpop.permute.xlu0 %1333
      %1335 = vrot.lane.b32.xlu0 %v639, 20
      %v1336 = vpop.permute.xlu0 %1335
      %1337 = vrot.lane.b32.xlu0 %v640, 20
      %v1338 = vpop.permute.xlu0 %1337
      %1339 = vrot.lane.b32.xlu0 %v641, 20
      %v1340 = vpop.permute.xlu0 %1339
      %1341 = vrot.lane.b32.xlu0 %v642, 20
      %v1342 = vpop.permute.xlu0 %1341
      %1343 = vrot.lane.b32.xlu0 %v643, 20
      %v1344 = vpop.permute.xlu0 %1343
      %1345 = vrot.lane.b32.xlu0 %v644, 20
      %v1346 = vpop.permute.xlu0 %1345
      %1347 = vrot.lane.b32.xlu0 %v645, 20
      %v1348 = vpop.permute.xlu0 %1347
      %1349 = vrot.lane.b32.xlu0 %v646, 20
      %v1350 = vpop.permute.xlu0 %1349
      %1351 = vrot.lane.b32.xlu0 %v647, 20
      %v1352 = vpop.permute.xlu0 %1351
      %1417 = vrot.lane.b32.xlu0 %v649, 24
      %v1418 = vpop.permute.xlu0 %1417
      %1419 = vrot.lane.b32.xlu0 %v650, 24
      %v1420 = vpop.permute.xlu0 %1419
      %1421 = vrot.lane.b32.xlu0 %v651, 24
      %v1422 = vpop.permute.xlu0 %1421
      %1423 = vrot.lane.b32.xlu0 %v652, 24
      %v1424 = vpop.permute.xlu0 %1423
      %1425 = vrot.lane.b32.xlu0 %v653, 24
      %v1426 = vpop.permute.xlu0 %1425
      %1427 = vrot.lane.b32.xlu0 %v654, 24
      %v1428 = vpop.permute.xlu0 %1427
      %1429 = vrot.lane.b32.xlu0 %v655, 24
      %v1430 = vpop.permute.xlu0 %1429
      %1431 = vrot.lane.b32.xlu0 %v656, 24
      %v1432 = vpop.permute.xlu0 %1431
      %1433 = vrot.lane.b32.xlu0 %v657, 24
      %v1434 = vpop.permute.xlu0 %1433
      %1435 = vrot.lane.b32.xlu0 %v658, 24
      %v1436 = vpop.permute.xlu0 %1435
      %1437 = vrot.lane.b32.xlu0 %v659, 24
      %v1438 = vpop.permute.xlu0 %1437
      %1439 = vrot.lane.b32.xlu0 %v660, 24
      %v1440 = vpop.permute.xlu0 %1439
      %1441 = vrot.lane.b32.xlu0 %v661, 24
      %v1442 = vpop.permute.xlu0 %1441
      %1443 = vrot.lane.b32.xlu0 %v662, 24
      %v1444 = vpop.permute.xlu0 %1443
      %1445 = vrot.lane.b32.xlu0 %v663, 24
      %v1446 = vpop.permute.xlu0 %1445
      %1447 = vrot.lane.b32.xlu0 %v664, 24
      %v1448 = vpop.permute.xlu0 %1447
      %1449 = vrot.lane.b32.xlu0 %v665, 24
      %v1450 = vpop.permute.xlu0 %1449
      %1451 = vrot.lane.b32.xlu0 %v666, 24
      %v1452 = vpop.permute.xlu0 %1451
      %1453 = vrot.lane.b32.xlu0 %v667, 24
      %v1454 = vpop.permute.xlu0 %1453
      %1455 = vrot.lane.b32.xlu0 %v668, 24
      %v1456 = vpop.permute.xlu0 %1455
      %1457 = vrot.lane.b32.xlu0 %v669, 24
      %v1458 = vpop.permute.xlu0 %1457
      %1459 = vrot.lane.b32.xlu0 %v670, 24
      %v1460 = vpop.permute.xlu0 %1459
      %1461 = vrot.lane.b32.xlu0 %v671, 24
      %v1462 = vpop.permute.xlu0 %1461
      %1463 = vrot.lane.b32.xlu0 %v672, 24
      %v1464 = vpop.permute.xlu0 %1463
      %1465 = vrot.lane.b32.xlu0 %v673, 24
      %v1466 = vpop.permute.xlu0 %1465
      %1467 = vrot.lane.b32.xlu0 %v674, 24
      %v1468 = vpop.permute.xlu0 %1467
      %1469 = vrot.lane.b32.xlu0 %v675, 24
      %v1470 = vpop.permute.xlu0 %1469
      %1471 = vrot.lane.b32.xlu0 %v676, 24
      %v1472 = vpop.permute.xlu0 %1471
      %1473 = vrot.lane.b32.xlu0 %v677, 24
      %v1474 = vpop.permute.xlu0 %1473
      %1475 = vrot.lane.b32.xlu0 %v678, 24
      %v1476 = vpop.permute.xlu0 %1475
      %1477 = vrot.lane.b32.xlu0 %v679, 24
      %v1478 = vpop.permute.xlu0 %1477
      %1479 = vrot.lane.b32.xlu0 %v680, 24
      %v1480 = vpop.permute.xlu0 %1479
      %1545 = vrot.lane.b32.xlu0 %v681, 28
      %v1546 = vpop.permute.xlu0 %1545
      %1547 = vrot.lane.b32.xlu0 %v682, 28
      %v1548 = vpop.permute.xlu0 %1547
      %1549 = vrot.lane.b32.xlu0 %v683, 28
      %v1550 = vpop.permute.xlu0 %1549
      %1551 = vrot.lane.b32.xlu0 %v684, 28
      %v1552 = vpop.permute.xlu0 %1551
      %1553 = vrot.lane.b32.xlu0 %v685, 28
      %v1554 = vpop.permute.xlu0 %1553
      %1555 = vrot.lane.b32.xlu0 %v686, 28
      %v1556 = vpop.permute.xlu0 %1555
      %1557 = vrot.lane.b32.xlu0 %v687, 28
      %v1558 = vpop.permute.xlu0 %1557
      %1559 = vrot.lane.b32.xlu0 %v688, 28
      %v1560 = vpop.permute.xlu0 %1559
      %1561 = vrot.lane.b32.xlu0 %v689, 28
      %v1562 = vpop.permute.xlu0 %1561
      %1563 = vrot.lane.b32.xlu0 %v690, 28
      %v1564 = vpop.permute.xlu0 %1563
      %1565 = vrot.lane.b32.xlu0 %v691, 28
      %v1566 = vpop.permute.xlu0 %1565
      %1567 = vrot.lane.b32.xlu0 %v692, 28
      %v1568 = vpop.permute.xlu0 %1567
      %1569 = vrot.lane.b32.xlu0 %v693, 28
      %v1570 = vpop.permute.xlu0 %1569
      %1571 = vrot.lane.b32.xlu0 %v694, 28
      %v1572 = vpop.permute.xlu0 %1571
      %1573 = vrot.lane.b32.xlu0 %v695, 28
      %v1574 = vpop.permute.xlu0 %1573
      %1575 = vrot.lane.b32.xlu0 %v696, 28
      %v1576 = vpop.permute.xlu0 %1575
      %1577 = vrot.lane.b32.xlu0 %v697, 28
      %v1578 = vpop.permute.xlu0 %1577
      %1579 = vrot.lane.b32.xlu0 %v698, 28
      %v1580 = vpop.permute.xlu0 %1579
      %1581 = vrot.lane.b32.xlu0 %v699, 28
      %v1582 = vpop.permute.xlu0 %1581
      %1583 = vrot.lane.b32.xlu0 %v700, 28
      %v1584 = vpop.permute.xlu0 %1583
      %1585 = vrot.lane.b32.xlu0 %v701, 28
      %v1586 = vpop.permute.xlu0 %1585
      %1587 = vrot.lane.b32.xlu0 %v702, 28
      %v1588 = vpop.permute.xlu0 %1587
      %1589 = vrot.lane.b32.xlu0 %v703, 28
      %v1590 = vpop.permute.xlu0 %1589
      %1591 = vrot.lane.b32.xlu0 %v704, 28
      %v1592 = vpop.permute.xlu0 %1591
      %1593 = vrot.lane.b32.xlu0 %v705, 28
      %v1594 = vpop.permute.xlu0 %1593
      %1595 = vrot.lane.b32.xlu0 %v706, 28
      %v1596 = vpop.permute.xlu0 %1595
      %1597 = vrot.lane.b32.xlu0 %v707, 28
      %v1598 = vpop.permute.xlu0 %1597
      %1599 = vrot.lane.b32.xlu0 %v708, 28
      %v1600 = vpop.permute.xlu0 %1599
      %1601 = vrot.lane.b32.xlu0 %v709, 28
      %v1602 = vpop.permute.xlu0 %1601
      %1603 = vrot.lane.b32.xlu0 %v710, 28
      %v1604 = vpop.permute.xlu0 %1603
      %1605 = vrot.lane.b32.xlu0 %v711, 28
      %v1606 = vpop.permute.xlu0 %1605
      %1607 = vrot.lane.b32.xlu0 %v712, 28
      %v1608 = vpop.permute.xlu0 %1607
      %1673 = vrot.lane.b32.xlu0 %v713, 32
      %v1674 = vpop.permute.xlu0 %1673
      %1675 = vrot.lane.b32.xlu0 %v714, 32
      %v1676 = vpop.permute.xlu0 %1675
      %1677 = vrot.lane.b32.xlu0 %v715, 32
      %v1678 = vpop.permute.xlu0 %1677
      %1679 = vrot.lane.b32.xlu0 %v716, 32
      %v1680 = vpop.permute.xlu0 %1679
      %1681 = vrot.lane.b32.xlu0 %v717, 32
      %v1682 = vpop.permute.xlu0 %1681
      %1683 = vrot.lane.b32.xlu0 %v718, 32
      %v1684 = vpop.permute.xlu0 %1683
      %1685 = vrot.lane.b32.xlu0 %v719, 32
      %v1686 = vpop.permute.xlu0 %1685
      %1687 = vrot.lane.b32.xlu0 %v720, 32
      %v1688 = vpop.permute.xlu0 %1687
      %1689 = vrot.lane.b32.xlu0 %v721, 32
      %v1690 = vpop.permute.xlu0 %1689
      %1691 = vrot.lane.b32.xlu0 %v722, 32
      %v1692 = vpop.permute.xlu0 %1691
      %1693 = vrot.lane.b32.xlu0 %v723, 32
      %v1694 = vpop.permute.xlu0 %1693
      %1695 = vrot.lane.b32.xlu0 %v724, 32
      %v1696 = vpop.permute.xlu0 %1695
      %1697 = vrot.lane.b32.xlu0 %v725, 32
      %v1698 = vpop.permute.xlu0 %1697
      %1699 = vrot.lane.b32.xlu0 %v726, 32
      %v1700 = vpop.permute.xlu0 %1699
      %1701 = vrot.lane.b32.xlu0 %v727, 32
      %v1702 = vpop.permute.xlu0 %1701
      %1703 = vrot.lane.b32.xlu0 %v728, 32
      %v1704 = vpop.permute.xlu0 %1703
      %1705 = vrot.lane.b32.xlu0 %v729, 32
      %v1706 = vpop.permute.xlu0 %1705
      %1707 = vrot.lane.b32.xlu0 %v730, 32
      %v1708 = vpop.permute.xlu0 %1707
      %1709 = vrot.lane.b32.xlu0 %v731, 32
      %v1710 = vpop.permute.xlu0 %1709
      %1711 = vrot.lane.b32.xlu0 %v732, 32
      %v1712 = vpop.permute.xlu0 %1711
      %1713 = vrot.lane.b32.xlu0 %v733, 32
      %v1714 = vpop.permute.xlu0 %1713
      %1715 = vrot.lane.b32.xlu0 %v734, 32
      %v1716 = vpop.permute.xlu0 %1715
      %1717 = vrot.lane.b32.xlu0 %v735, 32
      %v1718 = vpop.permute.xlu0 %1717
      %1719 = vrot.lane.b32.xlu0 %v736, 32
      %v1720 = vpop.permute.xlu0 %1719
      %1721 = vrot.lane.b32.xlu0 %v737, 32
      %v1722 = vpop.permute.xlu0 %1721
      %1723 = vrot.lane.b32.xlu0 %v738, 32
      %v1724 = vpop.permute.xlu0 %1723
      %1725 = vrot.lane.b32.xlu0 %v739, 32
      %v1726 = vpop.permute.xlu0 %1725
      %1727 = vrot.lane.b32.xlu0 %v740, 32
      %v1728 = vpop.permute.xlu0 %1727
      %1729 = vrot.lane.b32.xlu0 %v741, 32
      %v1730 = vpop.permute.xlu0 %1729
      %1731 = vrot.lane.b32.xlu0 %v742, 32
      %v1732 = vpop.permute.xlu0 %1731
      %1733 = vrot.lane.b32.xlu0 %v743, 32
      %v1734 = vpop.permute.xlu0 %1733
      %1735 = vrot.lane.b32.xlu0 %v744, 32
      %v1736 = vpop.permute.xlu0 %1735
      %v1769 = vsel %vm335, %v456, %v778
      %v1770 = vsel %vm335, %v457, %v780
      %v1771 = vsel %vm335, %v458, %v782
      %v1772 = vsel %vm335, %v459, %v784
      %v1773 = vsel %vm335, %v460, %v786
      %v1774 = vsel %vm335, %v461, %v788
      %v1775 = vsel %vm335, %v462, %v790
      %v1776 = vsel %vm335, %v463, %v792
      %v1777 = vsel %vm335, %v464, %v794
      %v1778 = vsel %vm335, %v465, %v796
      %v1779 = vsel %vm335, %v466, %v798
      %v1780 = vsel %vm335, %v467, %v800
      %v1781 = vsel %vm335, %v468, %v802
      %v1782 = vsel %vm335, %v469, %v804
      %v1783 = vsel %vm335, %v470, %v806
      %v1784 = vsel %vm335, %v471, %v808
      %v1785 = vsel %vm335, %v472, %v810
      %v1786 = vsel %vm335, %v473, %v812
      %v1787 = vsel %vm335, %v474, %v814
      %v1788 = vsel %vm335, %v475, %v816
      %v1789 = vsel %vm335, %v476, %v818
      %v1790 = vsel %vm335, %v477, %v820
      %v1791 = vsel %vm335, %v478, %v822
      %v1792 = vsel %vm335, %v479, %v824
      %v1793 = vsel %vm335, %v480, %v826
      %v1794 = vsel %vm335, %v481, %v828
      %v1795 = vsel %vm335, %v482, %v830
      %v1796 = vsel %vm335, %v483, %v832
      %v1797 = vsel %vm335, %v484, %v834
      %v1798 = vsel %vm335, %v485, %v836
      %v1799 = vsel %vm335, %v486, %v838
      %v1800 = vsel %vm335, %v487, %v840
      %vm1801 = vcmask 64512
      %v1802 = vsel %vm1801, %v1769, %v906
      %v1803 = vsel %vm1801, %v1770, %v908
      %v1804 = vsel %vm1801, %v1771, %v910
      %v1805 = vsel %vm1801, %v1772, %v912
      %v1806 = vsel %vm1801, %v1773, %v914
      %v1807 = vsel %vm1801, %v1774, %v916
      %v1808 = vsel %vm1801, %v1775, %v918
      %v1809 = vsel %vm1801, %v1776, %v920
      %v1810 = vsel %vm1801, %v1777, %v922
      %v1811 = vsel %vm1801, %v1778, %v924
      %v1812 = vsel %vm1801, %v1779, %v926
      %v1813 = vsel %vm1801, %v1780, %v928
      %v1814 = vsel %vm1801, %v1781, %v930
      %v1815 = vsel %vm1801, %v1782, %v932
      %v1816 = vsel %vm1801, %v1783, %v934
      %v1817 = vsel %vm1801, %v1784, %v936
      %v1818 = vsel %vm1801, %v1785, %v938
      %v1819 = vsel %vm1801, %v1786, %v940
      %v1820 = vsel %vm1801, %v1787, %v942
      %v1821 = vsel %vm1801, %v1788, %v944
      %v1822 = vsel %vm1801, %v1789, %v946
      %v1823 = vsel %vm1801, %v1790, %v948
      %v1824 = vsel %vm1801, %v1791, %v950
      %v1825 = vsel %vm1801, %v1792, %v952
      %v1826 = vsel %vm1801, %v1793, %v954
      %v1827 = vsel %vm1801, %v1794, %v956
      %v1828 = vsel %vm1801, %v1795, %v958
      %v1829 = vsel %vm1801, %v1796, %v960
      %v1830 = vsel %vm1801, %v1797, %v962
      %v1831 = vsel %vm1801, %v1798, %v964
      %v1832 = vsel %vm1801, %v1799, %v966
      %v1833 = vsel %vm1801, %v1800, %v968
      %vm1834 = vcmask 97280
      %v1835 = vsel %vm1834, %v1802, %v1034
      %v1836 = vsel %vm1834, %v1803, %v1036
      %v1837 = vsel %vm1834, %v1804, %v1038
      %v1838 = vsel %vm1834, %v1805, %v1040
      %v1839 = vsel %vm1834, %v1806, %v1042
      %v1840 = vsel %vm1834, %v1807, %v1044
      %v1841 = vsel %vm1834, %v1808, %v1046
      %v1842 = vsel %vm1834, %v1809, %v1048
      %v1843 = vsel %vm1834, %v1810, %v1050
      %v1844 = vsel %vm1834, %v1811, %v1052
      %v1845 = vsel %vm1834, %v1812, %v1054
      %v1846 = vsel %vm1834, %v1813, %v1056
      %v1847 = vsel %vm1834, %v1814, %v1058
      %v1848 = vsel %vm1834, %v1815, %v1060
      %v1849 = vsel %vm1834, %v1816, %v1062
      %v1850 = vsel %vm1834, %v1817, %v1064
      %v1851 = vsel %vm1834, %v1818, %v1066
      %v1852 = vsel %vm1834, %v1819, %v1068
      %v1853 = vsel %vm1834, %v1820, %v1070
      %v1854 = vsel %vm1834, %v1821, %v1072
      %v1855 = vsel %vm1834, %v1822, %v1074
      %v1856 = vsel %vm1834, %v1823, %v1076
      %v1857 = vsel %vm1834, %v1824, %v1078
      %v1858 = vsel %vm1834, %v1825, %v1080
      %v1859 = vsel %vm1834, %v1826, %v1082
      %v1860 = vsel %vm1834, %v1827, %v1084
      %v1861 = vsel %vm1834, %v1828, %v1086
      %v1862 = vsel %vm1834, %v1829, %v1088
      %v1863 = vsel %vm1834, %v1830, %v1090
      %v1864 = vsel %vm1834, %v1831, %v1092
      %v1865 = vsel %vm1834, %v1832, %v1094
      %v1866 = vsel %vm1834, %v1833, %v1096
      %vm1867 = vcmask 130048
      %v1868 = vsel %vm1867, %v1835, %v1162
      %v1869 = vsel %vm1867, %v1836, %v1164
      %v1870 = vsel %vm1867, %v1837, %v1166
      %v1871 = vsel %vm1867, %v1838, %v1168
      %v1872 = vsel %vm1867, %v1839, %v1170
      %v1873 = vsel %vm1867, %v1840, %v1172
      %v1874 = vsel %vm1867, %v1841, %v1174
      %v1875 = vsel %vm1867, %v1842, %v1176
      %v1876 = vsel %vm1867, %v1843, %v1178
      %v1877 = vsel %vm1867, %v1844, %v1180
      %v1878 = vsel %vm1867, %v1845, %v1182
      %v1879 = vsel %vm1867, %v1846, %v1184
      %v1880 = vsel %vm1867, %v1847, %v1186
      %v1881 = vsel %vm1867, %v1848, %v1188
      %v1882 = vsel %vm1867, %v1849, %v1190
      %v1883 = vsel %vm1867, %v1850, %v1192
      %v1884 = vsel %vm1867, %v1851, %v1194
      %v1885 = vsel %vm1867, %v1852, %v1196
      %v1886 = vsel %vm1867, %v1853, %v1198
      %v1887 = vsel %vm1867, %v1854, %v1200
      %v1888 = vsel %vm1867, %v1855, %v1202
      %v1889 = vsel %vm1867, %v1856, %v1204
      %v1890 = vsel %vm1867, %v1857, %v1206
      %v1891 = vsel %vm1867, %v1858, %v1208
      %v1892 = vsel %vm1867, %v1859, %v1210
      %v1893 = vsel %vm1867, %v1860, %v1212
      %v1894 = vsel %vm1867, %v1861, %v1214
      %v1895 = vsel %vm1867, %v1862, %v1216
      %v1896 = vsel %vm1867, %v1863, %v1218
      %v1897 = vsel %vm1867, %v1864, %v1220
      %v1898 = vsel %vm1867, %v1865, %v1222
      %v1899 = vsel %vm1867, %v1866, %v1224
      %vm1900 = vcmask 162816
      %v1901 = vsel %vm1900, %v1868, %v1290
      %v1902 = vsel %vm1900, %v1869, %v1292
      %v1903 = vsel %vm1900, %v1870, %v1294
      %v1904 = vsel %vm1900, %v1871, %v1296
      %v1905 = vsel %vm1900, %v1872, %v1298
      %v1906 = vsel %vm1900, %v1873, %v1300
      %v1907 = vsel %vm1900, %v1874, %v1302
      %v1908 = vsel %vm1900, %v1875, %v1304
      %v1909 = vsel %vm1900, %v1876, %v1306
      %v1910 = vsel %vm1900, %v1877, %v1308
      %v1911 = vsel %vm1900, %v1878, %v1310
      %v1912 = vsel %vm1900, %v1879, %v1312
      %v1913 = vsel %vm1900, %v1880, %v1314
      %v1914 = vsel %vm1900, %v1881, %v1316
      %v1915 = vsel %vm1900, %v1882, %v1318
      %v1916 = vsel %vm1900, %v1883, %v1320
      %v1917 = vsel %vm1900, %v1884, %v1322
      %v1918 = vsel %vm1900, %v1885, %v1324
      %v1919 = vsel %vm1900, %v1886, %v1326
      %v1920 = vsel %vm1900, %v1887, %v1328
      %v1921 = vsel %vm1900, %v1888, %v1330
      %v1922 = vsel %vm1900, %v1889, %v1332
      %v1923 = vsel %vm1900, %v1890, %v1334
      %v1924 = vsel %vm1900, %v1891, %v1336
      %v1925 = vsel %vm1900, %v1892, %v1338
      %v1926 = vsel %vm1900, %v1893, %v1340
      %v1927 = vsel %vm1900, %v1894, %v1342
      %v1928 = vsel %vm1900, %v1895, %v1344
      %v1929 = vsel %vm1900, %v1896, %v1346
      %v1930 = vsel %vm1900, %v1897, %v1348
      %v1931 = vsel %vm1900, %v1898, %v1350
      %v1932 = vsel %vm1900, %v1899, %v1352
      %vm1933 = vcmask 195584
      %v1934 = vsel %vm1933, %v1901, %v1418
      %v1935 = vsel %vm1933, %v1902, %v1420
      %v1936 = vsel %vm1933, %v1903, %v1422
      %v1937 = vsel %vm1933, %v1904, %v1424
      %v1938 = vsel %vm1933, %v1905, %v1426
      %v1939 = vsel %vm1933, %v1906, %v1428
      %v1940 = vsel %vm1933, %v1907, %v1430
      %v1941 = vsel %vm1933, %v1908, %v1432
      %v1942 = vsel %vm1933, %v1909, %v1434
      %v1943 = vsel %vm1933, %v1910, %v1436
      %v1944 = vsel %vm1933, %v1911, %v1438
      %v1945 = vsel %vm1933, %v1912, %v1440
      %v1946 = vsel %vm1933, %v1913, %v1442
      %v1947 = vsel %vm1933, %v1914, %v1444
      %v1948 = vsel %vm1933, %v1915, %v1446
      %v1949 = vsel %vm1933, %v1916, %v1448
      %v1950 = vsel %vm1933, %v1917, %v1450
      %v1951 = vsel %vm1933, %v1918, %v1452
      %v1952 = vsel %vm1933, %v1919, %v1454
      %v1953 = vsel %vm1933, %v1920, %v1456
      %v1954 = vsel %vm1933, %v1921, %v1458
      %v1955 = vsel %vm1933, %v1922, %v1460
      %v1956 = vsel %vm1933, %v1923, %v1462
      %v1957 = vsel %vm1933, %v1924, %v1464
      %v1958 = vsel %vm1933, %v1925, %v1466
      %v1959 = vsel %vm1933, %v1926, %v1468
      %v1960 = vsel %vm1933, %v1927, %v1470
      %v1961 = vsel %vm1933, %v1928, %v1472
      %v1962 = vsel %vm1933, %v1929, %v1474
      %v1963 = vsel %vm1933, %v1930, %v1476
      %v1964 = vsel %vm1933, %v1931, %v1478
      %v1965 = vsel %vm1933, %v1932, %v1480
      %vm1966 = vcmask 228352
      %v1967 = vsel %vm1966, %v1934, %v1546
      %v1968 = vsel %vm1966, %v1935, %v1548
      %v1969 = vsel %vm1966, %v1936, %v1550
      %v1970 = vsel %vm1966, %v1937, %v1552
      %v1971 = vsel %vm1966, %v1938, %v1554
      %v1972 = vsel %vm1966, %v1939, %v1556
      %v1973 = vsel %vm1966, %v1940, %v1558
      %v1974 = vsel %vm1966, %v1941, %v1560
      %v1975 = vsel %vm1966, %v1942, %v1562
      %v1976 = vsel %vm1966, %v1943, %v1564
      %v1977 = vsel %vm1966, %v1944, %v1566
      %v1978 = vsel %vm1966, %v1945, %v1568
      %v1979 = vsel %vm1966, %v1946, %v1570
      %v1980 = vsel %vm1966, %v1947, %v1572
      %v1981 = vsel %vm1966, %v1948, %v1574
      %v1982 = vsel %vm1966, %v1949, %v1576
      %v1983 = vsel %vm1966, %v1950, %v1578
      %v1984 = vsel %vm1966, %v1951, %v1580
      %v1985 = vsel %vm1966, %v1952, %v1582
      %v1986 = vsel %vm1966, %v1953, %v1584
      %v1987 = vsel %vm1966, %v1954, %v1586
      %v1988 = vsel %vm1966, %v1955, %v1588
      %v1989 = vsel %vm1966, %v1956, %v1590
      %v1990 = vsel %vm1966, %v1957, %v1592
      %v1991 = vsel %vm1966, %v1958, %v1594
      %v1992 = vsel %vm1966, %v1959, %v1596
      %v1993 = vsel %vm1966, %v1960, %v1598
      %v1994 = vsel %vm1966, %v1961, %v1600
      %v1995 = vsel %vm1966, %v1962, %v1602
      %v1996 = vsel %vm1966, %v1963, %v1604
      %v1997 = vsel %vm1966, %v1964, %v1606
      %v1998 = vsel %vm1966, %v1965, %v1608
      %vm1999 = vcmask 261120
      %v2000 = vsel %vm1999, %v1967, %v1674
      %v2001 = vsel %vm1999, %v1968, %v1676
      %v2002 = vsel %vm1999, %v1969, %v1678
      %v2003 = vsel %vm1999, %v1970, %v1680
      %v2004 = vsel %vm1999, %v1971, %v1682
      %v2005 = vsel %vm1999, %v1972, %v1684
      %v2006 = vsel %vm1999, %v1973, %v1686
      %v2007 = vsel %vm1999, %v1974, %v1688
      %v2008 = vsel %vm1999, %v1975, %v1690
      %v2009 = vsel %vm1999, %v1976, %v1692
      %v2010 = vsel %vm1999, %v1977, %v1694
      %v2011 = vsel %vm1999, %v1978, %v1696
      %v2012 = vsel %vm1999, %v1979, %v1698
      %v2013 = vsel %vm1999, %v1980, %v1700
      %v2014 = vsel %vm1999, %v1981, %v1702
      %v2015 = vsel %vm1999, %v1982, %v1704
      %v2016 = vsel %vm1999, %v1983, %v1706
      %v2017 = vsel %vm1999, %v1984, %v1708
      %v2018 = vsel %vm1999, %v1985, %v1710
      %v2019 = vsel %vm1999, %v1986, %v1712
      %v2020 = vsel %vm1999, %v1987, %v1714
      %v2021 = vsel %vm1999, %v1988, %v1716
      %v2022 = vsel %vm1999, %v1989, %v1718
      %v2023 = vsel %vm1999, %v1990, %v1720
      %v2024 = vsel %vm1999, %v1991, %v1722
      %v2025 = vsel %vm1999, %v1992, %v1724
      %v2026 = vsel %vm1999, %v1993, %v1726
      %v2027 = vsel %vm1999, %v1994, %v1728
      %v2028 = vsel %vm1999, %v1995, %v1730
      %v2029 = vsel %vm1999, %v1996, %v1732
      %v2030 = vsel %vm1999, %v1997, %v1734
      %v2031 = vsel %vm1999, %v1998, %v1736
      %v2032 = vpack.c.bf16 %v2001, %v2000
      %v2033 = vpack.c.bf16 %v2003, %v2002
      %v2034 = vpack.c.bf16 %v2005, %v2004
      %v2035 = vpack.c.bf16 %v2007, %v2006
      %v2036 = vpack.c.bf16 %v2009, %v2008
      %v2037 = vpack.c.bf16 %v2011, %v2010
      %v2038 = vpack.c.bf16 %v2013, %v2012
      %v2039 = vpack.c.bf16 %v2015, %v2014
      %v2040 = vpack.c.bf16 %v2017, %v2016
      %v2041 = vpack.c.bf16 %v2019, %v2018
      %v2042 = vpack.c.bf16 %v2021, %v2020
      %v2043 = vpack.c.bf16 %v2023, %v2022
      %v2044 = vpack.c.bf16 %v2025, %v2024
      %v2045 = vpack.c.bf16 %v2027, %v2026
      %v2046 = vpack.c.bf16 %v2029, %v2028
      %v2047 = vpack.c.bf16 %v2031, %v2030
      %v2048 = vld [vmem:[%s1] sm:$0xf]
      %v2049 = vld [vmem:[%s1 + $0x4] sm:$0xf]
      %v2050 = vld [vmem:[%s1 + $0x8] sm:$0xf]
      %v2051 = vld [vmem:[%s1 + $0xc] sm:$0xf]
      %v2052 = vld [vmem:[%s1 + $0x10] sm:$0x3]
      %v2053 = vld [vmem:[%s2] sm:$0x1]
      %v2055 = vlaneseq
      %v2056 = vshrl.u32 %v2055, 7
      %v2057 = vsub.s32 0, %v2056
      %v2058 = vrot.slane %v2053, %v2057
      %v2065 = vunpack.c.l.b16 %v2048
      %v2066 = vunpack.c.l.b16 %v2049
      %v2067 = vunpack.c.l.b16 %v2050
      %v2068 = vunpack.c.l.b16 %v2051
      %v2069 = vunpack.c.l.b16 %v2052
      %v2070 = vpack.c.b16 %v2066, %v2065
      %v2071 = vpack.c.b16 %v2068, %v2067
      %v2072 = vpack.c.b16 %v2069, %v2069
      %vm2075 = vcmask 293888
      %v2077 = vsel %vm2075, %v2032, 0
      %v2080 = vsel %vm2075, %v2033, 0
      %v2083 = vsel %vm2075, %v2034, 0
      %v2086 = vsel %vm2075, %v2035, 0
      %v2089 = vsel %vm2075, %v2036, 0
      %v2092 = vsel %vm2075, %v2037, 0
      %v2095 = vsel %vm2075, %v2038, 0
      %v2098 = vsel %vm2075, %v2039, 0
      %v2101 = vsel %vm2075, %v2040, 0
      %v2104 = vsel %vm2075, %v2041, 0
      %v2107 = vsel %vm2075, %v2042, 0
      %v2110 = vsel %vm2075, %v2043, 0
      %v2113 = vsel %vm2075, %v2044, 0
      %v2116 = vsel %vm2075, %v2045, 0
      %v2119 = vsel %vm2075, %v2046, 0
      %v2122 = vsel %vm2075, %v2047, 0
      %vm2124 = vcmask 1041408
      %v2126 = vsel %vm2124, %v2072, 0
      %2128 = vmatprep.subr.bf16.mxu0 0
      %2129 = vmatpush1.bf16.msra.mxu0 0
      %2130 = vmatprep.subr.bf16.mxu0 0
      %2131 = vmatpush1.bf16.msra.mxu0 0
      %2132 = vmatprep.subr.bf16.mxu0 0
      %2133 = vmatpush1.bf16.msra.mxu0 0
      %2134 = vmatprep.subr.bf16.mxu0 0
      %2135 = vmatpush1.bf16.msra.mxu0 0
      %2136 = vmatprep.subr.bf16.mxu0 0
      %2137 = vmatpush1.bf16.msra.mxu0 0
      %2138 = vmatprep.subr.bf16.mxu0 0
      %2139 = vmatpush1.bf16.msra.mxu0 %v2126
      %2140 = vmatprep.subr.bf16.mxu0 0
      %2141 = vmatpush1.bf16.msra.mxu0 %v2071
      %2142 = vmatprep.subr.bf16.mxu0 0
      %2143 = vmatpush1.bf16.msra.mxu0 %v2070
      %2144 = vmatprep.subr.bf16.mxu0 0
      %2145 = vmatpush2.bf16.msra.mxu0 0
      %2146 = vmatprep.subr.bf16.mxu0 0
      %2147 = vmatpush2.bf16.msra.mxu0 0
      %2148 = vmatprep.subr.bf16.mxu0 0
      %2149 = vmatpush2.bf16.msra.mxu0 0
      %2150 = vmatprep.subr.bf16.mxu0 0
      %2151 = vmatpush2.bf16.msra.mxu0 0
      %2152 = vmatprep.subr.bf16.mxu0 0
      %2153 = vmatpush2.bf16.msra.mxu0 0
      %2154 = vmatprep.subr.bf16.mxu0 0
      %2155 = vmatpush2.bf16.msra.mxu0 0
      %2156 = vmatprep.subr.bf16.mxu0 0
      %2157 = vmatpush2.bf16.msra.mxu0 0
      %2158 = vmatprep.subr.bf16.mxu0 0
      %2159 = vmatpush2.bf16.msra.mxu0 0
      %2160 = vmatprep.mubr.bf16.mxu0 0
      %2161 = vmatmul.mubr.bf16.gmra.mxu0 %v2077
      %v2162 = vpop.f32.mrf.mxu0
      %v2163 = vadd.f32 %v2058, %v2162
      %v2164 = vpop.f32.mrf.mxu0
      %v2165 = vpop.f32.mrf.mxu0
      %v2166 = vadd.f32 %v2058, %v2165
      %v2167 = vpop.f32.mrf.mxu0
      %2168 = vmatprep.mubr.bf16.mxu0 0
      %2169 = vmatmul.mubr.bf16.gmra.mxu0 %v2080
      %v2170 = vpop.f32.mrf.mxu0
      %v2171 = vadd.f32 %v2058, %v2170
      %v2172 = vpop.f32.mrf.mxu0
      %v2173 = vpop.f32.mrf.mxu0
      %v2174 = vadd.f32 %v2058, %v2173
      %v2175 = vpop.f32.mrf.mxu0
      %2176 = vmatprep.mubr.bf16.mxu0 0
      %2177 = vmatmul.mubr.bf16.gmra.mxu0 %v2083
      %v2178 = vpop.f32.mrf.mxu0
      %v2179 = vadd.f32 %v2058, %v2178
      %v2180 = vpop.f32.mrf.mxu0
      %v2181 = vpop.f32.mrf.mxu0
      %v2182 = vadd.f32 %v2058, %v2181
      %v2183 = vpop.f32.mrf.mxu0
      %2184 = vmatprep.mubr.bf16.mxu0 0
      %2185 = vmatmul.mubr.bf16.gmra.mxu0 %v2086
      %v2186 = vpop.f32.mrf.mxu0
      %v2187 = vadd.f32 %v2058, %v2186
      %v2188 = vpop.f32.mrf.mxu0
      %v2189 = vpop.f32.mrf.mxu0
      %v2190 = vadd.f32 %v2058, %v2189
      %v2191 = vpop.f32.mrf.mxu0
      %2192 = vmatprep.mubr.bf16.mxu0 0
      %2193 = vmatmul.mubr.bf16.gmra.mxu0 %v2089
      %v2194 = vpop.f32.mrf.mxu0
      %v2195 = vadd.f32 %v2058, %v2194
      %v2196 = vpop.f32.mrf.mxu0
      %v2197 = vpop.f32.mrf.mxu0
      %v2198 = vadd.f32 %v2058, %v2197
      %v2199 = vpop.f32.mrf.mxu0
      %2200 = vmatprep.mubr.bf16.mxu0 0
      %2201 = vmatmul.mubr.bf16.gmra.mxu0 %v2092
      %v2202 = vpop.f32.mrf.mxu0
      %v2203 = vadd.f32 %v2058, %v2202
      %v2204 = vpop.f32.mrf.mxu0
      %v2205 = vpop.f32.mrf.mxu0
      %v2206 = vadd.f32 %v2058, %v2205
      %v2207 = vpop.f32.mrf.mxu0
      %2208 = vmatprep.mubr.bf16.mxu0 0
      %2209 = vmatmul.mubr.bf16.gmra.mxu0 %v2095
      %v2210 = vpop.f32.mrf.mxu0
      %v2211 = vadd.f32 %v2058, %v2210
      %v2212 = vpop.f32.mrf.mxu0
      %v2213 = vpop.f32.mrf.mxu0
      %v2214 = vadd.f32 %v2058, %v2213
      %v2215 = vpop.f32.mrf.mxu0
      %2216 = vmatprep.mubr.bf16.mxu0 0
      %2217 = vmatmul.mubr.bf16.gmra.mxu0 %v2098
      %v2218 = vpop.f32.mrf.mxu0
      %v2219 = vadd.f32 %v2058, %v2218
      %v2220 = vpop.f32.mrf.mxu0
      %v2221 = vpop.f32.mrf.mxu0
      %v2222 = vadd.f32 %v2058, %v2221
      %v2223 = vpop.f32.mrf.mxu0
      %2224 = vmatprep.mubr.bf16.mxu0 0
      %2225 = vmatmul.mubr.bf16.gmra.mxu0 %v2101
      %v2226 = vpop.f32.mrf.mxu0
      %v2227 = vadd.f32 %v2058, %v2226
      %v2228 = vpop.f32.mrf.mxu0
      %v2229 = vpop.f32.mrf.mxu0
      %v2230 = vadd.f32 %v2058, %v2229
      %v2231 = vpop.f32.mrf.mxu0
      %2232 = vmatprep.mubr.bf16.mxu0 0
      %2233 = vmatmul.mubr.bf16.gmra.mxu0 %v2104
      %v2234 = vpop.f32.mrf.mxu0
      %v2235 = vadd.f32 %v2058, %v2234
      %v2236 = vpop.f32.mrf.mxu0
      %v2237 = vpop.f32.mrf.mxu0
      %v2238 = vadd.f32 %v2058, %v2237
      %v2239 = vpop.f32.mrf.mxu0
      %2240 = vmatprep.mubr.bf16.mxu0 0
      %2241 = vmatmul.mubr.bf16.gmra.mxu0 %v2107
      %v2242 = vpop.f32.mrf.mxu0
      %v2243 = vadd.f32 %v2058, %v2242
      %v2244 = vpop.f32.mrf.mxu0
      %v2245 = vpop.f32.mrf.mxu0
      %v2246 = vadd.f32 %v2058, %v2245
      %v2247 = vpop.f32.mrf.mxu0
      %2248 = vmatprep.mubr.bf16.mxu0 0
      %2249 = vmatmul.mubr.bf16.gmra.mxu0 %v2110
      %v2250 = vpop.f32.mrf.mxu0
      %v2251 = vadd.f32 %v2058, %v2250
      %v2252 = vpop.f32.mrf.mxu0
      %v2253 = vpop.f32.mrf.mxu0
      %v2254 = vadd.f32 %v2058, %v2253
      %v2255 = vpop.f32.mrf.mxu0
      %2256 = vmatprep.mubr.bf16.mxu0 0
      %2257 = vmatmul.mubr.bf16.gmra.mxu0 %v2113
      %v2258 = vpop.f32.mrf.mxu0
      %v2259 = vadd.f32 %v2058, %v2258
      %v2260 = vpop.f32.mrf.mxu0
      %v2261 = vpop.f32.mrf.mxu0
      %v2262 = vadd.f32 %v2058, %v2261
      %v2263 = vpop.f32.mrf.mxu0
      %2264 = vmatprep.mubr.bf16.mxu0 0
      %2265 = vmatmul.mubr.bf16.gmra.mxu0 %v2116
      %v2266 = vpop.f32.mrf.mxu0
      %v2267 = vadd.f32 %v2058, %v2266
      %v2268 = vpop.f32.mrf.mxu0
      %v2269 = vpop.f32.mrf.mxu0
      %v2270 = vadd.f32 %v2058, %v2269
      %v2271 = vpop.f32.mrf.mxu0
      %2272 = vmatprep.mubr.bf16.mxu0 0
      %2273 = vmatmul.mubr.bf16.gmra.mxu0 %v2119
      %v2274 = vpop.f32.mrf.mxu0
      %v2275 = vadd.f32 %v2058, %v2274
      %v2276 = vpop.f32.mrf.mxu0
      %v2277 = vpop.f32.mrf.mxu0
      %v2278 = vadd.f32 %v2058, %v2277
      %v2279 = vpop.f32.mrf.mxu0
      %2280 = vmatprep.mubr.bf16.mxu0 0
      %2281 = vmatmul.mubr.bf16.gmra.mxu0 %v2122
      %v2282 = vpop.f32.mrf.mxu0
      %v2283 = vadd.f32 %v2058, %v2282
      %v2284 = vpop.f32.mrf.mxu0
      %v2285 = vpop.f32.mrf.mxu0
      %v2286 = vadd.f32 %v2058, %v2285
      %v2287 = vpop.f32.mrf.mxu0
      %2288 = vdwg.mxu0
      %v2289 = vsel %vm1867, %v2163, 0.0
      %v2290 = vsel %vm1867, %v2166, 0.0
      %v2291 = vadd.f32 %v2289, %v2290
      %v2292 = vsel %vm1867, %v2171, 0.0
      %v2293 = vadd.f32 %v2291, %v2292
      %v2294 = vsel %vm1867, %v2174, 0.0
      %v2295 = vadd.f32 %v2293, %v2294
      %v2296 = vsel %vm1867, %v2179, 0.0
      %v2297 = vadd.f32 %v2295, %v2296
      %v2298 = vsel %vm1867, %v2182, 0.0
      %v2299 = vadd.f32 %v2297, %v2298
      %v2300 = vsel %vm1867, %v2187, 0.0
      %v2301 = vadd.f32 %v2299, %v2300
      %v2302 = vsel %vm1867, %v2190, 0.0
      %v2303 = vadd.f32 %v2301, %v2302
      %v2304 = vsel %vm1867, %v2195, 0.0
      %v2305 = vadd.f32 %v2303, %v2304
      %v2306 = vsel %vm1867, %v2198, 0.0
      %v2307 = vadd.f32 %v2305, %v2306
      %v2308 = vsel %vm1867, %v2203, 0.0
      %v2309 = vadd.f32 %v2307, %v2308
      %v2310 = vsel %vm1867, %v2206, 0.0
      %v2311 = vadd.f32 %v2309, %v2310
      %v2312 = vsel %vm1867, %v2211, 0.0
      %v2313 = vadd.f32 %v2311, %v2312
      %v2314 = vsel %vm1867, %v2214, 0.0
      %v2315 = vadd.f32 %v2313, %v2314
      %v2316 = vsel %vm1867, %v2219, 0.0
      %v2317 = vadd.f32 %v2315, %v2316
      %v2318 = vsel %vm1867, %v2222, 0.0
      %v2319 = vadd.f32 %v2317, %v2318
      %v2320 = vsel %vm1867, %v2227, 0.0
      %v2321 = vadd.f32 %v2319, %v2320
      %v2322 = vsel %vm1867, %v2230, 0.0
      %v2323 = vadd.f32 %v2321, %v2322
      %v2324 = vsel %vm1867, %v2235, 0.0
      %v2325 = vadd.f32 %v2323, %v2324
      %v2326 = vsel %vm1867, %v2238, 0.0
      %v2327 = vadd.f32 %v2325, %v2326
      %v2328 = vsel %vm1867, %v2243, 0.0
      %v2329 = vadd.f32 %v2327, %v2328
      %v2330 = vsel %vm1867, %v2246, 0.0
      %v2331 = vadd.f32 %v2329, %v2330
      %v2332 = vsel %vm1867, %v2251, 0.0
      %v2333 = vadd.f32 %v2331, %v2332
      %v2334 = vsel %vm1867, %v2254, 0.0
      %v2335 = vadd.f32 %v2333, %v2334
      %v2336 = vsel %vm1867, %v2259, 0.0
      %v2337 = vadd.f32 %v2335, %v2336
      %v2338 = vsel %vm1867, %v2262, 0.0
      %v2339 = vadd.f32 %v2337, %v2338
      %v2340 = vsel %vm1867, %v2267, 0.0
      %v2341 = vadd.f32 %v2339, %v2340
      %v2342 = vsel %vm1867, %v2270, 0.0
      %v2343 = vadd.f32 %v2341, %v2342
      %v2344 = vsel %vm1867, %v2275, 0.0
      %v2345 = vadd.f32 %v2343, %v2344
      %v2346 = vsel %vm1867, %v2278, 0.0
      %v2347 = vadd.f32 %v2345, %v2346
      %v2348 = vsel %vm1867, %v2283, 0.0
      %v2349 = vadd.f32 %v2347, %v2348
      %v2350 = vsel %vm1867, %v2286, 0.0
      %v2351 = vadd.f32 %v2349, %v2350
      %v2352 = vrot.slane %v2351, 4
      %v2353 = vadd.f32 %v2351, %v2352
      %v2354 = vrot.slane %v2353, 2
      %v2355 = vadd.f32 %v2353, %v2354
      %v2356 = vrot.slane %v2355, 1
      %v2357 = vadd.f32 %v2355, %v2356
      %v2358 = vmul.f32 %v2163, %v2163
      %v2359 = vmul.f32 %v2166, %v2166
      %v2360 = vmul.f32 %v2171, %v2171
      %v2361 = vmul.f32 %v2174, %v2174
      %v2362 = vmul.f32 %v2179, %v2179
      %v2363 = vmul.f32 %v2182, %v2182
      %v2364 = vmul.f32 %v2187, %v2187
      %v2365 = vmul.f32 %v2190, %v2190
      %v2366 = vmul.f32 %v2195, %v2195
      %v2367 = vmul.f32 %v2198, %v2198
      %v2368 = vmul.f32 %v2203, %v2203
      %v2369 = vmul.f32 %v2206, %v2206
      %v2370 = vmul.f32 %v2211, %v2211
      %v2371 = vmul.f32 %v2214, %v2214
      %v2372 = vmul.f32 %v2219, %v2219
      %v2373 = vmul.f32 %v2222, %v2222
      %v2374 = vmul.f32 %v2227, %v2227
      %v2375 = vmul.f32 %v2230, %v2230
      %v2376 = vmul.f32 %v2235, %v2235
      %v2377 = vmul.f32 %v2238, %v2238
      %v2378 = vmul.f32 %v2243, %v2243
      %v2379 = vmul.f32 %v2246, %v2246
      %v2380 = vmul.f32 %v2251, %v2251
      %v2381 = vmul.f32 %v2254, %v2254
      %v2382 = vmul.f32 %v2259, %v2259
      %v2383 = vmul.f32 %v2262, %v2262
      %v2384 = vmul.f32 %v2267, %v2267
      %v2385 = vmul.f32 %v2270, %v2270
      %v2386 = vmul.f32 %v2275, %v2275
      %v2387 = vmul.f32 %v2278, %v2278
      %v2388 = vmul.f32 %v2283, %v2283
      %v2389 = vmul.f32 %v2286, %v2286
      %v2390 = vsel %vm1867, %v2358, 0.0
      %v2391 = vsel %vm1867, %v2359, 0.0
      %v2392 = vadd.f32 %v2390, %v2391
      %v2393 = vsel %vm1867, %v2360, 0.0
      %v2394 = vadd.f32 %v2392, %v2393
      %v2395 = vsel %vm1867, %v2361, 0.0
      %v2396 = vadd.f32 %v2394, %v2395
      %v2397 = vsel %vm1867, %v2362, 0.0
      %v2398 = vadd.f32 %v2396, %v2397
      %v2399 = vsel %vm1867, %v2363, 0.0
      %v2400 = vadd.f32 %v2398, %v2399
      %v2401 = vsel %vm1867, %v2364, 0.0
      %v2402 = vadd.f32 %v2400, %v2401
      %v2403 = vsel %vm1867, %v2365, 0.0
      %v2404 = vadd.f32 %v2402, %v2403
      %v2405 = vsel %vm1867, %v2366, 0.0
      %v2406 = vadd.f32 %v2404, %v2405
      %v2407 = vsel %vm1867, %v2367, 0.0
      %v2408 = vadd.f32 %v2406, %v2407
      %v2409 = vsel %vm1867, %v2368, 0.0
      %v2410 = vadd.f32 %v2408, %v2409
      %v2411 = vsel %vm1867, %v2369, 0.0
      %v2412 = vadd.f32 %v2410, %v2411
      %v2413 = vsel %vm1867, %v2370, 0.0
      %v2414 = vadd.f32 %v2412, %v2413
      %v2415 = vsel %vm1867, %v2371, 0.0
      %v2416 = vadd.f32 %v2414, %v2415
      %v2417 = vsel %vm1867, %v2372, 0.0
      %v2418 = vadd.f32 %v2416, %v2417
      %v2419 = vsel %vm1867, %v2373, 0.0
      %v2420 = vadd.f32 %v2418, %v2419
      %v2421 = vsel %vm1867, %v2374, 0.0
      %v2422 = vadd.f32 %v2420, %v2421
      %v2423 = vsel %vm1867, %v2375, 0.0
      %v2424 = vadd.f32 %v2422, %v2423
      %v2425 = vsel %vm1867, %v2376, 0.0
      %v2426 = vadd.f32 %v2424, %v2425
      %v2427 = vsel %vm1867, %v2377, 0.0
      %v2428 = vadd.f32 %v2426, %v2427
      %v2429 = vsel %vm1867, %v2378, 0.0
      %v2430 = vadd.f32 %v2428, %v2429
      %v2431 = vsel %vm1867, %v2379, 0.0
      %v2432 = vadd.f32 %v2430, %v2431
      %v2433 = vsel %vm1867, %v2380, 0.0
      %v2434 = vadd.f32 %v2432, %v2433
      %v2435 = vsel %vm1867, %v2381, 0.0
      %v2436 = vadd.f32 %v2434, %v2435
      %v2437 = vsel %vm1867, %v2382, 0.0
      %v2438 = vadd.f32 %v2436, %v2437
      %v2439 = vsel %vm1867, %v2383, 0.0
      %v2440 = vadd.f32 %v2438, %v2439
      %v2441 = vsel %vm1867, %v2384, 0.0
      %v2442 = vadd.f32 %v2440, %v2441
      %v2443 = vsel %vm1867, %v2385, 0.0
      %v2444 = vadd.f32 %v2442, %v2443
      %v2445 = vsel %vm1867, %v2386, 0.0
      %v2446 = vadd.f32 %v2444, %v2445
      %v2447 = vsel %vm1867, %v2387, 0.0
      %v2448 = vadd.f32 %v2446, %v2447
      %v2449 = vsel %vm1867, %v2388, 0.0
      %v2450 = vadd.f32 %v2448, %v2449
      %v2451 = vsel %vm1867, %v2389, 0.0
      %v2452 = vadd.f32 %v2450, %v2451
      %v2453 = vrot.slane %v2452, 4
      %v2454 = vadd.f32 %v2452, %v2453
      %v2455 = vrot.slane %v2454, 2
      %v2456 = vadd.f32 %v2454, %v2455
      %v2457 = vrot.slane %v2456, 1
      %v2458 = vadd.f32 %v2456, %v2457
      %v2459 = vld [vmem:[%s5] sm:$0xff]
      %v2460 = vld [vmem:[%s5 + $0x8] sm:$0xff]
      %v2462 = vsel %vm1867, %v2357, 0
      %2464 = vmatprep.subr.mxu0 0.0
      %2465 = vmatpush1.msra.mxu0 0.0
      %2466 = vmatprep.subr.mxu0 0.0
      %2467 = vmatpush1.msra.mxu0 0.0
      %2468 = vmatprep.subr.mxu0 0.0
      %2469 = vmatpush1.msra.mxu0 0.0
      %2470 = vmatprep.subr.mxu0 0.0
      %2471 = vmatpush1.msra.mxu0 0.0
      %2472 = vmatprep.subr.mxu0 0.0
      %2473 = vmatpush1.msra.mxu0 0.0
      %2474 = vmatprep.subr.mxu0 0.0
      %2475 = vmatpush1.msra.mxu0 0.0
      %2476 = vmatprep.subr.mxu0 0.0
      %2477 = vmatpush1.msra.mxu0 0.0
      %2478 = vmatprep.subr.mxu0 0.0
      %2479 = vmatpush1.msra.mxu0 0.0
      %2480 = vmatprep.subr.mxu0 0.0
      %2481 = vmatpush1.msra.mxu0 0.0
      %2482 = vmatprep.subr.mxu0 0.0
      %2483 = vmatpush1.msra.mxu0 0.0
      %2484 = vmatprep.subr.mxu0 0.0
      %2485 = vmatpush1.msra.mxu0 0.0
      %2486 = vmatprep.subr.mxu0 0.0
      %2487 = vmatpush1.msra.mxu0 0.0
      %2488 = vmatprep.subr.mxu0 0.0
      %2489 = vmatpush1.msra.mxu0 0.0
      %2490 = vmatprep.subr.mxu0 0.0
      %2491 = vmatpush1.msra.mxu0 0.0
      %2492 = vmatprep.subr.mxu0 0.0
      %2493 = vmatpush1.msra.mxu0 %v2460
      %2494 = vmatprep.subr.mxu0 0.0
      %2495 = vmatpush1.msra.mxu0 %v2459
      %2496 = vmatprep.subr.mxu0 0.0
      %2497 = vmatpush2.msra.mxu0 0.0
      %2498 = vmatprep.subr.mxu0 0.0
      %2499 = vmatpush2.msra.mxu0 0.0
      %2500 = vmatprep.subr.mxu0 0.0
      %2501 = vmatpush2.msra.mxu0 0.0
      %2502 = vmatprep.subr.mxu0 0.0
      %2503 = vmatpush2.msra.mxu0 0.0
      %2504 = vmatprep.subr.mxu0 0.0
      %2505 = vmatpush2.msra.mxu0 0.0
      %2506 = vmatprep.subr.mxu0 0.0
      %2507 = vmatpush2.msra.mxu0 0.0
      %2508 = vmatprep.subr.mxu0 0.0
      %2509 = vmatpush2.msra.mxu0 0.0
      %2510 = vmatprep.subr.mxu0 0.0
      %2511 = vmatpush2.msra.mxu0 0.0
      %2512 = vmatprep.subr.mxu0 0.0
      %2513 = vmatpush2.msra.mxu0 0.0
      %2514 = vmatprep.subr.mxu0 0.0
      %2515 = vmatpush2.msra.mxu0 0.0
      %2516 = vmatprep.subr.mxu0 0.0
      %2517 = vmatpush2.msra.mxu0 0.0
      %2518 = vmatprep.subr.mxu0 0.0
      %2519 = vmatpush2.msra.mxu0 0.0
      %2520 = vmatprep.subr.mxu0 0.0
      %2521 = vmatpush2.msra.mxu0 0.0
      %2522 = vmatprep.subr.mxu0 0.0
      %2523 = vmatpush2.msra.mxu0 0.0
      %2524 = vmatprep.subr.mxu0 0.0
      %2525 = vmatpush2.msra.mxu0 0.0
      %2526 = vmatprep.subr.mxu0 0.0
      %2527 = vmatpush2.msra.mxu0 0.0
      %2528 = vmatprep.mubr.f32.mxu0 0.0
      %2529 = vmatmul.mubr.f32.gmra.mxu0 %v2462
      %v2530 = vpop.f32.mrf.mxu0
      %v2531 = vadd.f32 0.0, %v2530
      %v2532 = vpop.f32.mrf.mxu0
      %2533 = vdwg.mxu0
      %v2535 = vsel %vm1867, %v2458, 0
      %2537 = vmatprep.subr.mxu0 0.0
      %2538 = vmatpush1.msra.mxu0 0.0
      %2539 = vmatprep.subr.mxu0 0.0
      %2540 = vmatpush1.msra.mxu0 0.0
      %2541 = vmatprep.subr.mxu0 0.0
      %2542 = vmatpush1.msra.mxu0 0.0
      %2543 = vmatprep.subr.mxu0 0.0
      %2544 = vmatpush1.msra.mxu0 0.0
      %2545 = vmatprep.subr.mxu0 0.0
      %2546 = vmatpush1.msra.mxu0 0.0
      %2547 = vmatprep.subr.mxu0 0.0
      %2548 = vmatpush1.msra.mxu0 0.0
      %2549 = vmatprep.subr.mxu0 0.0
      %2550 = vmatpush1.msra.mxu0 0.0
      %2551 = vmatprep.subr.mxu0 0.0
      %2552 = vmatpush1.msra.mxu0 0.0
      %2553 = vmatprep.subr.mxu0 0.0
      %2554 = vmatpush1.msra.mxu0 0.0
      %2555 = vmatprep.subr.mxu0 0.0
      %2556 = vmatpush1.msra.mxu0 0.0
      %2557 = vmatprep.subr.mxu0 0.0
      %2558 = vmatpush1.msra.mxu0 0.0
      %2559 = vmatprep.subr.mxu0 0.0
      %2560 = vmatpush1.msra.mxu0 0.0
      %2561 = vmatprep.subr.mxu0 0.0
      %2562 = vmatpush1.msra.mxu0 0.0
      %2563 = vmatprep.subr.mxu0 0.0
      %2564 = vmatpush1.msra.mxu0 0.0
      %2565 = vmatprep.subr.mxu0 0.0
      %2566 = vmatpush1.msra.mxu0 %v2460
      %2567 = vmatprep.subr.mxu0 0.0
      %2568 = vmatpush1.msra.mxu0 %v2459
      %2569 = vmatprep.subr.mxu0 0.0
      %2570 = vmatpush2.msra.mxu0 0.0
      %2571 = vmatprep.subr.mxu0 0.0
      %2572 = vmatpush2.msra.mxu0 0.0
      %2573 = vmatprep.subr.mxu0 0.0
      %2574 = vmatpush2.msra.mxu0 0.0
      %2575 = vmatprep.subr.mxu0 0.0
      %2576 = vmatpush2.msra.mxu0 0.0
      %2577 = vmatprep.subr.mxu0 0.0
      %2578 = vmatpush2.msra.mxu0 0.0
      %2579 = vmatprep.subr.mxu0 0.0
      %2580 = vmatpush2.msra.mxu0 0.0
      %2581 = vmatprep.subr.mxu0 0.0
      %2582 = vmatpush2.msra.mxu0 0.0
      %2583 = vmatprep.subr.mxu0 0.0
      %2584 = vmatpush2.msra.mxu0 0.0
      %2585 = vmatprep.subr.mxu0 0.0
      %2586 = vmatpush2.msra.mxu0 0.0
      %2587 = vmatprep.subr.mxu0 0.0
      %2588 = vmatpush2.msra.mxu0 0.0
      %2589 = vmatprep.subr.mxu0 0.0
      %2590 = vmatpush2.msra.mxu0 0.0
      %2591 = vmatprep.subr.mxu0 0.0
      %2592 = vmatpush2.msra.mxu0 0.0
      %2593 = vmatprep.subr.mxu0 0.0
      %2594 = vmatpush2.msra.mxu0 0.0
      %2595 = vmatprep.subr.mxu0 0.0
      %2596 = vmatpush2.msra.mxu0 0.0
      %2597 = vmatprep.subr.mxu0 0.0
      %2598 = vmatpush2.msra.mxu0 0.0
      %2599 = vmatprep.subr.mxu0 0.0
      %2600 = vmatpush2.msra.mxu0 0.0
      %2601 = vmatprep.mubr.f32.mxu0 0.0
      %2602 = vmatmul.mubr.f32.gmra.mxu0 %v2535
      %v2603 = vpop.f32.mrf.mxu0
      %v2604 = vadd.f32 0.0, %v2603
      %v2605 = vpop.f32.mrf.mxu0
      %2606 = vdwg.mxu0
      %v2607 = vrcp.pop 512.0
      %v2608 = vmul.f32 %v2531, %v2607
      %v2609 = vmul.f32 %v2604, %v2607
      %v2610 = vmul.f32 %v2608, %v2608
      %v2611 = vsub.f32 %v2609, %v2610
      %v2612 = vmax.f32 %v2611, 0.0
      %v2613 = vadd.f32 %v2612, 1e-05
      %v2614 = vrsqrt.pop %v2613
      %v2615 = vld [vmem:[%s325] sm:$0x1]
      %v2616 = vadd.f32 %v2615, 1.0
      %v2617 = vld [vmem:[%s3] sm:$0x1]
      %v2618 = vmul.f32 %v2617, %v2616
      %v2619 = vld [vmem:[%s4] sm:$0x1]
      %v2620 = vmul.f32 %v2619, %v2616
      %v2621 = vld [vmem:[%s328] sm:$0x1]
      %v2622 = vadd.f32 %v2620, %v2621
      %v2623 = vmul.f32 %v2614, %v2618
      %v2624 = vmul.f32 %v2608, %v2623
      %v2625 = vsub.f32 %v2622, %v2624
      %v2626 = vlaneseq
      %v2627 = vshrl.u32 %v2626, 7
      %v2628 = vsub.s32 0, %v2627
      %v2629 = vrot.slane %v2623, %v2628
      %v2630 = vmul.f32 %v2163, %v2629
      %v2631 = vmul.f32 %v2166, %v2629
      %v2632 = vmul.f32 %v2171, %v2629
      %v2633 = vmul.f32 %v2174, %v2629
      %v2634 = vmul.f32 %v2179, %v2629
      %v2635 = vmul.f32 %v2182, %v2629
      %v2636 = vmul.f32 %v2187, %v2629
      %v2637 = vmul.f32 %v2190, %v2629
      %v2638 = vmul.f32 %v2195, %v2629
      %v2639 = vmul.f32 %v2198, %v2629
      %v2640 = vmul.f32 %v2203, %v2629
      %v2641 = vmul.f32 %v2206, %v2629
      %v2642 = vmul.f32 %v2211, %v2629
      %v2643 = vmul.f32 %v2214, %v2629
      %v2644 = vmul.f32 %v2219, %v2629
      %v2645 = vmul.f32 %v2222, %v2629
      %v2646 = vmul.f32 %v2227, %v2629
      %v2647 = vmul.f32 %v2230, %v2629
      %v2648 = vmul.f32 %v2235, %v2629
      %v2649 = vmul.f32 %v2238, %v2629
      %v2650 = vmul.f32 %v2243, %v2629
      %v2651 = vmul.f32 %v2246, %v2629
      %v2652 = vmul.f32 %v2251, %v2629
      %v2653 = vmul.f32 %v2254, %v2629
      %v2654 = vmul.f32 %v2259, %v2629
      %v2655 = vmul.f32 %v2262, %v2629
      %v2656 = vmul.f32 %v2267, %v2629
      %v2657 = vmul.f32 %v2270, %v2629
      %v2658 = vmul.f32 %v2275, %v2629
      %v2659 = vmul.f32 %v2278, %v2629
      %v2660 = vmul.f32 %v2283, %v2629
      %v2661 = vmul.f32 %v2286, %v2629
      %v2663 = vlaneseq
      %v2664 = vshrl.u32 %v2663, 7
      %v2665 = vsub.s32 0, %v2664
      %v2666 = vrot.slane %v2625, %v2665
      %v2668 = vadd.f32 %v2630, %v2666
      %v2669 = vadd.f32 %v2631, %v2666
      %v2670 = vadd.f32 %v2632, %v2666
      %v2671 = vadd.f32 %v2633, %v2666
      %v2672 = vadd.f32 %v2634, %v2666
      %v2673 = vadd.f32 %v2635, %v2666
      %v2674 = vadd.f32 %v2636, %v2666
      %v2675 = vadd.f32 %v2637, %v2666
      %v2676 = vadd.f32 %v2638, %v2666
      %v2677 = vadd.f32 %v2639, %v2666
      %v2678 = vadd.f32 %v2640, %v2666
      %v2679 = vadd.f32 %v2641, %v2666
      %v2680 = vadd.f32 %v2642, %v2666
      %v2681 = vadd.f32 %v2643, %v2666
      %v2682 = vadd.f32 %v2644, %v2666
      %v2683 = vadd.f32 %v2645, %v2666
      %v2684 = vadd.f32 %v2646, %v2666
      %v2685 = vadd.f32 %v2647, %v2666
      %v2686 = vadd.f32 %v2648, %v2666
      %v2687 = vadd.f32 %v2649, %v2666
      %v2688 = vadd.f32 %v2650, %v2666
      %v2689 = vadd.f32 %v2651, %v2666
      %v2690 = vadd.f32 %v2652, %v2666
      %v2691 = vadd.f32 %v2653, %v2666
      %v2692 = vadd.f32 %v2654, %v2666
      %v2693 = vadd.f32 %v2655, %v2666
      %v2694 = vadd.f32 %v2656, %v2666
      %v2695 = vadd.f32 %v2657, %v2666
      %v2696 = vadd.f32 %v2658, %v2666
      %v2697 = vadd.f32 %v2659, %v2666
      %v2698 = vadd.f32 %v2660, %v2666
      %v2699 = vadd.f32 %v2661, %v2666
      %v2700 = vxor.u32 %v2668, 2147483648
      %v2701 = vxor.u32 %v2669, 2147483648
      %v2702 = vxor.u32 %v2670, 2147483648
      %v2703 = vxor.u32 %v2671, 2147483648
      %v2704 = vxor.u32 %v2672, 2147483648
      %v2705 = vxor.u32 %v2673, 2147483648
      %v2706 = vxor.u32 %v2674, 2147483648
      %v2707 = vxor.u32 %v2675, 2147483648
      %v2708 = vxor.u32 %v2676, 2147483648
      %v2709 = vxor.u32 %v2677, 2147483648
      %v2710 = vxor.u32 %v2678, 2147483648
      %v2711 = vxor.u32 %v2679, 2147483648
      %v2712 = vxor.u32 %v2680, 2147483648
      %v2713 = vxor.u32 %v2681, 2147483648
      %v2714 = vxor.u32 %v2682, 2147483648
      %v2715 = vxor.u32 %v2683, 2147483648
      %v2716 = vxor.u32 %v2684, 2147483648
      %v2717 = vxor.u32 %v2685, 2147483648
      %v2718 = vxor.u32 %v2686, 2147483648
      %v2719 = vxor.u32 %v2687, 2147483648
      %v2720 = vxor.u32 %v2688, 2147483648
      %v2721 = vxor.u32 %v2689, 2147483648
      %v2722 = vxor.u32 %v2690, 2147483648
      %v2723 = vxor.u32 %v2691, 2147483648
      %v2724 = vxor.u32 %v2692, 2147483648
      %v2725 = vxor.u32 %v2693, 2147483648
      %v2726 = vxor.u32 %v2694, 2147483648
      %v2727 = vxor.u32 %v2695, 2147483648
      %v2728 = vxor.u32 %v2696, 2147483648
      %v2729 = vxor.u32 %v2697, 2147483648
      %v2730 = vxor.u32 %v2698, 2147483648
      %v2731 = vxor.u32 %v2699, 2147483648
      %v2732 = vmul.f32 %v2700, 1.442695
      %v2733 = vpow.pop %v2732
      %v2734 = vmul.f32 %v2701, 1.442695
      %v2735 = vpow.pop %v2734
      %v2736 = vmul.f32 %v2702, 1.442695
      %v2737 = vpow.pop %v2736
      %v2738 = vmul.f32 %v2703, 1.442695
      %v2739 = vpow.pop %v2738
      %v2740 = vmul.f32 %v2704, 1.442695
      %v2741 = vpow.pop %v2740
      %v2742 = vmul.f32 %v2705, 1.442695
      %v2743 = vpow.pop %v2742
      %v2744 = vmul.f32 %v2706, 1.442695
      %v2745 = vpow.pop %v2744
      %v2746 = vmul.f32 %v2707, 1.442695
      %v2747 = vpow.pop %v2746
      %v2748 = vmul.f32 %v2708, 1.442695
      %v2749 = vpow.pop %v2748
      %v2750 = vmul.f32 %v2709, 1.442695
      %v2751 = vpow.pop %v2750
      %v2752 = vmul.f32 %v2710, 1.442695
      %v2753 = vpow.pop %v2752
      %v2754 = vmul.f32 %v2711, 1.442695
      %v2755 = vpow.pop %v2754
      %v2756 = vmul.f32 %v2712, 1.442695
      %v2757 = vpow.pop %v2756
      %v2758 = vmul.f32 %v2713, 1.442695
      %v2759 = vpow.pop %v2758
      %v2760 = vmul.f32 %v2714, 1.442695
      %v2761 = vpow.pop %v2760
      %v2762 = vmul.f32 %v2715, 1.442695
      %v2763 = vpow.pop %v2762
      %v2764 = vmul.f32 %v2716, 1.442695
      %v2765 = vpow.pop %v2764
      %v2766 = vmul.f32 %v2717, 1.442695
      %v2767 = vpow.pop %v2766
      %v2768 = vmul.f32 %v2718, 1.442695
      %v2769 = vpow.pop %v2768
      %v2770 = vmul.f32 %v2719, 1.442695
      %v2771 = vpow.pop %v2770
      %v2772 = vmul.f32 %v2720, 1.442695
      %v2773 = vpow.pop %v2772
      %v2774 = vmul.f32 %v2721, 1.442695
      %v2775 = vpow.pop %v2774
      %v2776 = vmul.f32 %v2722, 1.442695
      %v2777 = vpow.pop %v2776
      %v2778 = vmul.f32 %v2723, 1.442695
      %v2779 = vpow.pop %v2778
      %v2780 = vmul.f32 %v2724, 1.442695
      %v2781 = vpow.pop %v2780
      %v2782 = vmul.f32 %v2725, 1.442695
      %v2783 = vpow.pop %v2782
      %v2784 = vmul.f32 %v2726, 1.442695
      %v2785 = vpow.pop %v2784
      %v2786 = vmul.f32 %v2727, 1.442695
      %v2787 = vpow.pop %v2786
      %v2788 = vmul.f32 %v2728, 1.442695
      %v2789 = vpow.pop %v2788
      %v2790 = vmul.f32 %v2729, 1.442695
      %v2791 = vpow.pop %v2790
      %v2792 = vmul.f32 %v2730, 1.442695
      %v2793 = vpow.pop %v2792
      %v2794 = vmul.f32 %v2731, 1.442695
      %v2795 = vpow.pop %v2794
      %v2796 = vadd.f32 %v2733, 1.0
      %v2797 = vadd.f32 %v2735, 1.0
      %v2798 = vadd.f32 %v2737, 1.0
      %v2799 = vadd.f32 %v2739, 1.0
      %v2800 = vadd.f32 %v2741, 1.0
      %v2801 = vadd.f32 %v2743, 1.0
      %v2802 = vadd.f32 %v2745, 1.0
      %v2803 = vadd.f32 %v2747, 1.0
      %v2804 = vadd.f32 %v2749, 1.0
      %v2805 = vadd.f32 %v2751, 1.0
      %v2806 = vadd.f32 %v2753, 1.0
      %v2807 = vadd.f32 %v2755, 1.0
      %v2808 = vadd.f32 %v2757, 1.0
      %v2809 = vadd.f32 %v2759, 1.0
      %v2810 = vadd.f32 %v2761, 1.0
      %v2811 = vadd.f32 %v2763, 1.0
      %v2812 = vadd.f32 %v2765, 1.0
      %v2813 = vadd.f32 %v2767, 1.0
      %v2814 = vadd.f32 %v2769, 1.0
      %v2815 = vadd.f32 %v2771, 1.0
      %v2816 = vadd.f32 %v2773, 1.0
      %v2817 = vadd.f32 %v2775, 1.0
      %v2818 = vadd.f32 %v2777, 1.0
      %v2819 = vadd.f32 %v2779, 1.0
      %v2820 = vadd.f32 %v2781, 1.0
      %v2821 = vadd.f32 %v2783, 1.0
      %v2822 = vadd.f32 %v2785, 1.0
      %v2823 = vadd.f32 %v2787, 1.0
      %v2824 = vadd.f32 %v2789, 1.0
      %v2825 = vadd.f32 %v2791, 1.0
      %v2826 = vadd.f32 %v2793, 1.0
      %v2827 = vadd.f32 %v2795, 1.0
      %v2828 = vrcp.pop %v2796
      %v2829 = vmul.f32 1.0, %v2828
      %v2830 = vrcp.pop %v2797
      %v2831 = vmul.f32 1.0, %v2830
      %v2832 = vrcp.pop %v2798
      %v2833 = vmul.f32 1.0, %v2832
      %v2834 = vrcp.pop %v2799
      %v2835 = vmul.f32 1.0, %v2834
      %v2836 = vrcp.pop %v2800
      %v2837 = vmul.f32 1.0, %v2836
      %v2838 = vrcp.pop %v2801
      %v2839 = vmul.f32 1.0, %v2838
      %v2840 = vrcp.pop %v2802
      %v2841 = vmul.f32 1.0, %v2840
      %v2842 = vrcp.pop %v2803
      %v2843 = vmul.f32 1.0, %v2842
      %v2844 = vrcp.pop %v2804
      %v2845 = vmul.f32 1.0, %v2844
      %v2846 = vrcp.pop %v2805
      %v2847 = vmul.f32 1.0, %v2846
      %v2848 = vrcp.pop %v2806
      %v2849 = vmul.f32 1.0, %v2848
      %v2850 = vrcp.pop %v2807
      %v2851 = vmul.f32 1.0, %v2850
      %v2852 = vrcp.pop %v2808
      %v2853 = vmul.f32 1.0, %v2852
      %v2854 = vrcp.pop %v2809
      %v2855 = vmul.f32 1.0, %v2854
      %v2856 = vrcp.pop %v2810
      %v2857 = vmul.f32 1.0, %v2856
      %v2858 = vrcp.pop %v2811
      %v2859 = vmul.f32 1.0, %v2858
      %v2860 = vrcp.pop %v2812
      %v2861 = vmul.f32 1.0, %v2860
      %v2862 = vrcp.pop %v2813
      %v2863 = vmul.f32 1.0, %v2862
      %v2864 = vrcp.pop %v2814
      %v2865 = vmul.f32 1.0, %v2864
      %v2866 = vrcp.pop %v2815
      %v2867 = vmul.f32 1.0, %v2866
      %v2868 = vrcp.pop %v2816
      %v2869 = vmul.f32 1.0, %v2868
      %v2870 = vrcp.pop %v2817
      %v2871 = vmul.f32 1.0, %v2870
      %v2872 = vrcp.pop %v2818
      %v2873 = vmul.f32 1.0, %v2872
      %v2874 = vrcp.pop %v2819
      %v2875 = vmul.f32 1.0, %v2874
      %v2876 = vrcp.pop %v2820
      %v2877 = vmul.f32 1.0, %v2876
      %v2878 = vrcp.pop %v2821
      %v2879 = vmul.f32 1.0, %v2878
      %v2880 = vrcp.pop %v2822
      %v2881 = vmul.f32 1.0, %v2880
      %v2882 = vrcp.pop %v2823
      %v2883 = vmul.f32 1.0, %v2882
      %v2884 = vrcp.pop %v2824
      %v2885 = vmul.f32 1.0, %v2884
      %v2886 = vrcp.pop %v2825
      %v2887 = vmul.f32 1.0, %v2886
      %v2888 = vrcp.pop %v2826
      %v2889 = vmul.f32 1.0, %v2888
      %v2890 = vrcp.pop %v2827
      %v2891 = vmul.f32 1.0, %v2890
      %v2892 = vmul.f32 %v2668, %v2829
      %v2893 = vmul.f32 %v2669, %v2831
      %v2894 = vmul.f32 %v2670, %v2833
      %v2895 = vmul.f32 %v2671, %v2835
      %v2896 = vmul.f32 %v2672, %v2837
      %v2897 = vmul.f32 %v2673, %v2839
      %v2898 = vmul.f32 %v2674, %v2841
      %v2899 = vmul.f32 %v2675, %v2843
      %v2900 = vmul.f32 %v2676, %v2845
      %v2901 = vmul.f32 %v2677, %v2847
      %v2902 = vmul.f32 %v2678, %v2849
      %v2903 = vmul.f32 %v2679, %v2851
      %v2904 = vmul.f32 %v2680, %v2853
      %v2905 = vmul.f32 %v2681, %v2855
      %v2906 = vmul.f32 %v2682, %v2857
      %v2907 = vmul.f32 %v2683, %v2859
      %v2908 = vmul.f32 %v2684, %v2861
      %v2909 = vmul.f32 %v2685, %v2863
      %v2910 = vmul.f32 %v2686, %v2865
      %v2911 = vmul.f32 %v2687, %v2867
      %v2912 = vmul.f32 %v2688, %v2869
      %v2913 = vmul.f32 %v2689, %v2871
      %v2914 = vmul.f32 %v2690, %v2873
      %v2915 = vmul.f32 %v2691, %v2875
      %v2916 = vmul.f32 %v2692, %v2877
      %v2917 = vmul.f32 %v2693, %v2879
      %v2918 = vmul.f32 %v2694, %v2881
      %v2919 = vmul.f32 %v2695, %v2883
      %v2920 = vmul.f32 %v2696, %v2885
      %v2921 = vmul.f32 %v2697, %v2887
      %v2922 = vmul.f32 %v2698, %v2889
      %v2923 = vmul.f32 %v2699, %v2891
      %2924 = vst.msk [vmem:[%s333] sm:$0xff] %vm1867, %v2892
      %2925 = vst.msk [vmem:[%s333 + $0x8] sm:$0xff] %vm1867, %v2893
      %2926 = vst.msk [vmem:[%s333 + $0x10] sm:$0xff] %vm1867, %v2894
      %2927 = vst.msk [vmem:[%s333 + $0x18] sm:$0xff] %vm1867, %v2895
      %2928 = vst.msk [vmem:[%s333 + $0x20] sm:$0xff] %vm1867, %v2896
      %2929 = vst.msk [vmem:[%s333 + $0x28] sm:$0xff] %vm1867, %v2897
      %2930 = vst.msk [vmem:[%s333 + $0x30] sm:$0xff] %vm1867, %v2898
      %2931 = vst.msk [vmem:[%s333 + $0x38] sm:$0xff] %vm1867, %v2899
      %2932 = vst.msk [vmem:[%s333 + $0x40] sm:$0xff] %vm1867, %v2900
      %2933 = vst.msk [vmem:[%s333 + $0x48] sm:$0xff] %vm1867, %v2901
      %2934 = vst.msk [vmem:[%s333 + $0x50] sm:$0xff] %vm1867, %v2902
      %2935 = vst.msk [vmem:[%s333 + $0x58] sm:$0xff] %vm1867, %v2903
      %2936 = vst.msk [vmem:[%s333 + $0x60] sm:$0xff] %vm1867, %v2904
      %2937 = vst.msk [vmem:[%s333 + $0x68] sm:$0xff] %vm1867, %v2905
      %2938 = vst.msk [vmem:[%s333 + $0x70] sm:$0xff] %vm1867, %v2906
      %2939 = vst.msk [vmem:[%s333 + $0x78] sm:$0xff] %vm1867, %v2907
      %2940 = vst.msk [vmem:[%s333 + $0x80] sm:$0xff] %vm1867, %v2908
      %2941 = vst.msk [vmem:[%s333 + $0x88] sm:$0xff] %vm1867, %v2909
      %2942 = vst.msk [vmem:[%s333 + $0x90] sm:$0xff] %vm1867, %v2910
      %2943 = vst.msk [vmem:[%s333 + $0x98] sm:$0xff] %vm1867, %v2911
      %2944 = vst.msk [vmem:[%s333 + $0xa0] sm:$0xff] %vm1867, %v2912
      %2945 = vst.msk [vmem:[%s333 + $0xa8] sm:$0xff] %vm1867, %v2913
      %2946 = vst.msk [vmem:[%s333 + $0xb0] sm:$0xff] %vm1867, %v2914
      %2947 = vst.msk [vmem:[%s333 + $0xb8] sm:$0xff] %vm1867, %v2915
      %2948 = vst.msk [vmem:[%s333 + $0xc0] sm:$0xff] %vm1867, %v2916
      %2949 = vst.msk [vmem:[%s333 + $0xc8] sm:$0xff] %vm1867, %v2917
      %2950 = vst.msk [vmem:[%s333 + $0xd0] sm:$0xff] %vm1867, %v2918
      %2951 = vst.msk [vmem:[%s333 + $0xd8] sm:$0xff] %vm1867, %v2919
      %2952 = vst.msk [vmem:[%s333 + $0xe0] sm:$0xff] %vm1867, %v2920
      %2953 = vst.msk [vmem:[%s333 + $0xe8] sm:$0xff] %vm1867, %v2921
      %2954 = vst.msk [vmem:[%s333 + $0xf0] sm:$0xff] %vm1867, %v2922
      %2955 = vst.msk [vmem:[%s333 + $0xf8] sm:$0xff] %vm1867, %v2923
      %p2956 = scmp.lt.s32.totalorder %s19, 1
      %s2957 = scalar_select %p2956, %s19, 1
      %s2958 = smul.addr %s2957, 32
      %s2959 = smul.addr %s2958, 8
      %s2960 = scalar_lea.vmem %s8, %s2959
      // Predicated region
      $region53: #{tpu_custom_call.1} parent=51 // pred_check
        %p2961 = pneg %p220
      $region54: #{tpu_custom_call.1} parent=51 // pred_check_branch
        %2963 = sbr.rel (%p2961) target = $region56
      $region55: #{tpu_custom_call.1} parent=51 // pred_region
        _
      $region56: #{tpu_custom_call.1} parent=51 // pred_fallthru
        _
    $region52: #{tpu_custom_call.1} parent=5 // pred_fallthru
      _
    %p2964 = scmp.le.s32.totalorder 2, %s14
    // Predicated region
    $region57: #{tpu_custom_call.1} parent=5 // pred_check
      %p2965 = pneg %p2964
    $region58: #{tpu_custom_call.1} parent=5 // pred_check_branch
      %2967 = sbr.rel (%p2965) target = $region60
    $region59: #{tpu_custom_call.1} parent=5 // pred_region
      %s2968 = ssub.s32 %s14, 2
      // Predicated region
      $region61: #{tpu_custom_call.1} parent=59 // pred_check
        %p2969 = pneg %p226
      $region62: #{tpu_custom_call.1} parent=59 // pred_check_branch
        %2971 = sbr.rel (%p2969) target = $region64
      $region63: #{tpu_custom_call.1} parent=59 // pred_region
        %p2972 = scmp.lt.s32.totalorder %s20, 1
        %s2973 = scalar_select %p2972, %s20, 1
        %s2974 = smul.addr %s2973, 32
        %s2975 = smul.addr %s2974, 8
        %s2976 = scalar_lea.vmem %s8, %s2975
      $region64: #{tpu_custom_call.1} parent=59 // pred_fallthru
        _
    $region60: #{tpu_custom_call.1} parent=5 // pred_fallthru
      _
  $region6: #{tpu_custom_call.1} parent=0 // loop_footer
    %s18 = sadd.s32 1, %s14
  $region7: #{tpu_custom_call.1} parent=0 // loop_footer_branch
    %13 = sbr.rel target = $region3
  $region8: #{tpu_custom_call.1} parent=0 // loop_exit
    _

</llo_original>
